<compile_context>
chip_gen: v5e
topology: v5e:2x2
jax: 0.10.0
libtpu: 0.0.40
codegen_flags: <defaults>
</compile_context>

<pallas_src>
import numpy as np
import jax
import jax.numpy as jnp
from jax.experimental import pallas as pl
from jax.experimental.pallas import tpu as pltpu

EPS = 1e-5                 # torch.nn.LayerNorm default eps
POOL_KS = (5, 7, 9)        # pool1/pool2/pool3 kernel sizes (pad = k // 2)
INV_SQRT2 = np.float32(0.7071067811865476)


# ----------------------------- Pallas kernel ------------------------------- #

def _transformer_layer_kernel(x_ref, g1_ref, b1_ref, pw_ref, pb_ref,
                              g2_ref, b2_ref, w1_ref, bb1_ref, w2_ref, bb2_ref,
                              aht_ref, aws_ref, o_ref):
    """One layer per grid step; activation x^T (dim, R) stays resident in o_ref."""
    layer = pl.program_id(0)

    @pl.when(layer == 0)
    def _():
        o_ref[...] = x_ref[...]

    xt = o_ref[...]                                   # (W, R) f32, lane-dense
    R = xt.shape[1]
    nk = aws_ref.shape[0]

    # ---------- Residual(LayerNorm -> Pooling) ----------
    g1 = g1_ref[0]                                    # (W, 1)  hoisted once
    b1 = b1_ref[0]
    mean = jnp.mean(xt, axis=0, keepdims=True)
    var = jnp.mean(jnp.square(xt - mean), axis=0, keepdims=True)
    n = (xt - mean) * jax.lax.rsqrt(var + EPS) * g1 + b1

    # One wide MXU push for all three H-direction box sums (1/count_h folded in).
    s = jnp.dot(n, aht_ref[...], preferred_element_type=jnp.float32)   # (W, nk*R)
    y = -float(nk) * n
    for k in range(nk):                               # static unroll, lane-aligned slices
        y = y + jnp.dot(aws_ref[k], s[:, k * R:(k + 1) * R],
                        preferred_element_type=jnp.float32)

    out = jnp.dot(pw_ref[0], y, preferred_element_type=jnp.float32) + pb_ref[0]
    xt = out + xt                                     # residual

    # ---------- Residual(LayerNorm -> MLP) ----------
    g2 = g2_ref[0]
    b2 = b2_ref[0]
    mean2 = jnp.mean(xt, axis=0, keepdims=True)
    var2 = jnp.mean(jnp.square(xt - mean2), axis=0, keepdims=True)
    n2 = (xt - mean2) * jax.lax.rsqrt(var2 + EPS) * g2 + b2

    h = jnp.dot(w1_ref[0], n2, preferred_element_type=jnp.float32) + bb1_ref[0]
    # exact (erf-based) GELU, matching torch.nn.GELU default
    h = 0.5 * h * (1.0 + jax.lax.erf(h * INV_SQRT2))
    o = jnp.dot(w2_ref[0], h, preferred_element_type=jnp.float32) + bb2_ref[0]

    o_ref[...] = (o + xt).astype(o_ref.dtype)         # dropout = identity


# ------------------------------ pallas_call wrapper ------------------------- #

def transformer_forward(x, params, pool_consts):
    B, C, H, W = x.shape
    R = B * C * H
    depth = len(params)
    aht, aws = pool_consts
    nk = aws.shape[0]
    Dh = params[0]["mlp_w1"].shape[1]

    xt = x.reshape(R, W).T                            # (W, R) lane-dense layout

    def col(v):                                       # (1, D) -> (D, 1)
        return v[0][:, None]

    # stack per-layer parameters; weights go in torch (out, in) orientation
    # because the kernel works on transposed activations (out^T = Wt @ x^T).
    g1 = jnp.stack([col(p["ln1_g"]) for p in params])       # (depth, W, 1)
    b1 = jnp.stack([col(p["ln1_b"]) for p in params])
    pw = jnp.stack([p["pool_w"].T for p in params])          # (depth, W, W)
    pb = jnp.stack([col(p["pool_b"]) for p in params])
    g2 = jnp.stack([col(p["ln2_g"]) for p in params])
    b2 = jnp.stack([col(p["ln2_b"]) for p in params])
    w1 = jnp.stack([p["mlp_w1"].T for p in params])          # (depth, Dh, W)
    bb1 = jnp.stack([col(p["mlp_b1"]) for p in params])      # (depth, Dh, 1)
    w2 = jnp.stack([p["mlp_w2"].T for p in params])          # (depth, W, Dh)
    bb2 = jnp.stack([col(p["mlp_b2"]) for p in params])      # (depth, W, 1)

    out_t = pl.pallas_call(
        _transformer_layer_kernel,
        out_shape=jax.ShapeDtypeStruct((W, R), x.dtype),
        grid_spec=pltpu.PrefetchScalarGridSpec(
            num_scalar_prefetch=0,
            grid=(depth,),                            # layers are sequential
            in_specs=[
                pl.BlockSpec((W, R), lambda l: (0, 0)),          # x^T
                pl.BlockSpec((1, W, 1), lambda l: (l, 0, 0)),    # ln1 gamma
                pl.BlockSpec((1, W, 1), lambda l: (l, 0, 0)),    # ln1 beta
                pl.BlockSpec((1, W, W), lambda l: (l, 0, 0)),    # pool linear W
                pl.BlockSpec((1, W, 1), lambda l: (l, 0, 0)),    # pool linear b
                pl.BlockSpec((1, W, 1), lambda l: (l, 0, 0)),    # ln2 gamma
                pl.BlockSpec((1, W, 1), lambda l: (l, 0, 0)),    # ln2 beta
                pl.BlockSpec((1, Dh, W), lambda l: (l, 0, 0)),   # mlp W1
                pl.BlockSpec((1, Dh, 1), lambda l: (l, 0, 0)),   # mlp b1
                pl.BlockSpec((1, W, Dh), lambda l: (l, 0, 0)),   # mlp W2
                pl.BlockSpec((1, W, 1), lambda l: (l, 0, 0)),    # mlp b2
                pl.BlockSpec((R, nk * R), lambda l: (0, 0)),     # AH^T (concat over k)
                pl.BlockSpec((nk, W, W), lambda l: (0, 0, 0)),   # AW (scaled)
            ],
            out_specs=pl.BlockSpec((W, R), lambda l: (0, 0)),    # resident in VMEM
        ),
        compiler_params=pltpu.CompilerParams(
            dimension_semantics=("arbitrary",)),
        # TODO(synk): on v7x a 2-way parallel leading axis over B*C could engage
        # both TensorCores; skipped here since the workload is launch-bound.
    )(xt, g1, b1, pw, pb, g2, b2, w1, bb1, w2, bb2, aht, aws)

    return out_t.T.reshape(B, C, H, W)


transformer_forward = jax.jit(transformer_forward)


# ----------------------------- parameters / constants ----------------------- #

def make_pool_consts(H, W, BC):
    """Band matrices with AvgPool2d(count_include_pad=False) 1/count folded in.

    Returns:
      aht_cat : (BC*H, nk*BC*H)  transposed, block-diagonal-over-images, row-scaled
                by 1/count_h H-direction box-sum operators, concatenated over k.
      aws     : (nk, W, W)       W-direction box-sum operators, row-scaled by 1/count_w
                (applied from the left on x^T).
    """
    ahts, aws_l = [], []
    eye_bc = np.eye(BC, dtype=np.float32)
    for k in POOL_KS:
        p = k // 2
        ih = np.arange(H)
        iw = np.arange(W)
        ah = (np.abs(ih[:, None] - ih[None, :]) <= p).astype(np.float32)
        aw = (np.abs(iw[:, None] - iw[None, :]) <= p).astype(np.float32)
        ch = ah.sum(axis=1)                      # valid H elements per output row
        cw = aw.sum(axis=1)                      # valid W elements per output col
        ah_s = ah / ch[:, None]                  # fold 1/count_h
        aw_s = aw / cw[:, None]                  # fold 1/count_w
        ahts.append(np.kron(eye_bc, ah_s).T)     # (R, R)
        aws_l.append(aw_s)
    aht_cat = np.concatenate(ahts, axis=1)       # (R, nk*R)
    return jnp.asarray(aht_cat), jnp.asarray(np.stack(aws_l))


def init_params(key, depth, dim, mlp_dim):
    params = []
    for d in range(depth):
        ks = jax.random.split(jax.random.fold_in(key, d), 6)
        params.append(dict(
            ln1_g=jnp.ones((1, dim), jnp.float32),
            ln1_b=jnp.zeros((1, dim), jnp.float32),
            pool_w=(jax.random.normal(ks[0], (dim, dim), jnp.float32) * 0.05),   # = weight.T
            pool_b=(jax.random.normal(ks[1], (1, dim), jnp.float32) * 0.05),
            ln2_g=jnp.ones((1, dim), jnp.float32),
            ln2_b=jnp.zeros((1, dim), jnp.float32),
            mlp_w1=(jax.random.normal(ks[2], (dim, mlp_dim), jnp.float32) * 0.05),
            mlp_b1=(jax.random.normal(ks[3], (1, mlp_dim), jnp.float32) * 0.05),
            mlp_w2=(jax.random.normal(ks[4], (mlp_dim, dim), jnp.float32) * 0.05),
            mlp_b2=(jax.random.normal(ks[5], (1, dim), jnp.float32) * 0.05),
        ))
    return params


# ----------------------------- pure-JAX reference --------------------------- #

def _ref_layernorm(z, g, b):
    m = jnp.mean(z, axis=-1, keepdims=True)
    v = jnp.mean(jnp.square(z - m), axis=-1, keepdims=True)
    return (z - m) / jnp.sqrt(v + EPS) * g[0] + b[0]


def _ref_avgpool(z, k):
    """AvgPool2d(kernel=k, stride=1, pad=k//2, count_include_pad=False) on (N,H,W)."""
    p = k // 2
    N, H, W = z.shape
    zp = jnp.pad(z, ((0, 0), (p, p), (p, p)))
    s = jnp.zeros_like(z)
    for di in range(k):
        for dj in range(k):
            s = s + zp[:, di:di + H, dj:dj + W]
    ih = jnp.arange(H)
    iw = jnp.arange(W)
    ch = jnp.minimum(ih + p, H - 1) - jnp.maximum(ih - p, 0) + 1
    cw = jnp.minimum(iw + p, W - 1) - jnp.maximum(iw - p, 0) + 1
    cnt = (ch[:, None] * cw[None, :]).astype(z.dtype)
    return s / cnt


def reference_forward(x, params):
    B, C, H, W = x.shape
    for layer in params:
        xf = x.reshape(B * C, H, W)
        n = _ref_layernorm(xf, layer["ln1_g"], layer["ln1_b"])
        y = sum(_ref_avgpool(n, k) - n for k in POOL_KS)
        out = jnp.dot(y, layer["pool_w"]) + layer["pool_b"][0]
        xf = out + xf

        x2 = xf.reshape(B * C * H, W)
        n2 = _ref_layernorm(x2, layer["ln2_g"], layer["ln2_b"])
        h = jnp.dot(n2, layer["mlp_w1"]) + layer["mlp_b1"][0]
        h = 0.5 * h * (1.0 + jax.lax.erf(h * INV_SQRT2))
        o = jnp.dot(h, layer["mlp_w2"]) + layer["mlp_b2"][0]
        x = (o + x2).reshape(B, C, H, W)
    return x


# ------------------------------------ main ---------------------------------- #

if __name__ == "__main__":
    B, C, H, dim = 2, 4, 16, 16        # last axis W == dim
    depth, heads, mlp_dim, dropout = 2, 4, 32, 0.1   # heads unused; dropout = identity (eval)

    key = jax.random.PRNGKey(0)
    kx, kp = jax.random.split(key)
    x = jax.random.normal(kx, (B, C, H, dim), jnp.float32)

    params = init_params(kp, depth, dim, mlp_dim)
    pool_consts = make_pool_consts(H, dim, B * C)

    out = transformer_forward(x, params, pool_consts)
    out = jax.block_until_ready(out)

    ref = reference_forward(x, params)
    assert out.shape == x.shape
    np.testing.assert_allclose(np.asarray(out), np.asarray(ref), rtol=2e-3, atol=2e-3)

    print("KERNEL_OK")
</pallas_src>

<mosaic_0001>
module attributes {stable_mosaic.version = 11 : i64} {
  func.func @_transformer_layer_kernel(%arg0: i32, %arg1: memref<16x128xf32, #tpu.memory_space<vmem>>, %arg2: memref<1x16x1xf32, #tpu.memory_space<vmem>>, %arg3: memref<1x16x1xf32, #tpu.memory_space<vmem>>, %arg4: memref<1x16x16xf32, #tpu.memory_space<vmem>>, %arg5: memref<1x16x1xf32, #tpu.memory_space<vmem>>, %arg6: memref<1x16x1xf32, #tpu.memory_space<vmem>>, %arg7: memref<1x16x1xf32, #tpu.memory_space<vmem>>, %arg8: memref<1x32x16xf32, #tpu.memory_space<vmem>>, %arg9: memref<1x32x1xf32, #tpu.memory_space<vmem>>, %arg10: memref<1x16x32xf32, #tpu.memory_space<vmem>>, %arg11: memref<1x16x1xf32, #tpu.memory_space<vmem>>, %arg12: memref<128x384xf32, #tpu.memory_space<vmem>>, %arg13: memref<3x16x16xf32, #tpu.memory_space<vmem>>, %arg14: memref<16x128xf32, #tpu.memory_space<vmem>>) attributes {dimension_semantics = [#tpu.dimension_semantics<arbitrary>], iteration_bounds = array<i64: 2>, scalar_prefetch = 0 : i64, scratch_operands = 0 : i64, tpu.core_type = #tpu.core_type<tc>, window_params = [{pipeline_mode = #tpu.pipeline_mode<synchronous>, transform_indices = @transform_0, window_bounds = array<i64: 16, 128>}, {transform_indices = @transform_1, window_bounds = array<i64: 1, 16, 1>}, {transform_indices = @transform_2, window_bounds = array<i64: 1, 16, 1>}, {transform_indices = @transform_3, window_bounds = array<i64: 1, 16, 16>}, {transform_indices = @transform_4, window_bounds = array<i64: 1, 16, 1>}, {transform_indices = @transform_5, window_bounds = array<i64: 1, 16, 1>}, {transform_indices = @transform_6, window_bounds = array<i64: 1, 16, 1>}, {transform_indices = @transform_7, window_bounds = array<i64: 1, 32, 16>}, {transform_indices = @transform_8, window_bounds = array<i64: 1, 32, 1>}, {transform_indices = @transform_9, window_bounds = array<i64: 1, 16, 32>}, {transform_indices = @transform_10, window_bounds = array<i64: 1, 16, 1>}, {pipeline_mode = #tpu.pipeline_mode<synchronous>, transform_indices = @transform_11, window_bounds = array<i64: 128, 384>}, {pipeline_mode = #tpu.pipeline_mode<synchronous>, transform_indices = @transform_12, window_bounds = array<i64: 3, 16, 16>}, {pipeline_mode = #tpu.pipeline_mode<synchronous>, transform_indices = @transform_13, window_bounds = array<i64: 16, 128>}]} {
    %c0_i32 = arith.constant 0 : i32
    %0 = arith.cmpi eq, %arg0, %c0_i32 : i32
    %1 = arith.extui %0 : i1 to i32
    %c0_i32_0 = arith.constant 0 : i32
    %2 = arith.cmpi ne, %1, %c0_i32_0 : i32
    scf.if %2 {
      %c0_63 = arith.constant 0 : index
      %c0_64 = arith.constant 0 : index
      %107 = vector.load %arg1[%c0_63, %c0_64] : memref<16x128xf32, #tpu.memory_space<vmem>>, vector<16x128xf32>
      %c0_65 = arith.constant 0 : index
      %c0_66 = arith.constant 0 : index
      %108 = vector.load %arg14[%c0_65, %c0_66] : memref<16x128xf32, #tpu.memory_space<vmem>>, vector<16x128xf32>
      tpu.vector_store %arg14[%c0_65, %c0_66], %107 {strides = array<i32>} : memref<16x128xf32, #tpu.memory_space<vmem>>, vector<16x128xf32>,
    } else {
    }
    %c0 = arith.constant 0 : index
    %c0_1 = arith.constant 0 : index
    %3 = vector.load %arg14[%c0, %c0_1] : memref<16x128xf32, #tpu.memory_space<vmem>>, vector<16x128xf32>
    %c0_2 = arith.constant 0 : index
    %c0_3 = arith.constant 0 : index
    %c0_4 = arith.constant 0 : index
    %4 = vector.load %arg2[%c0_2, %c0_3, %c0_4] : memref<1x16x1xf32, #tpu.memory_space<vmem>>, vector<1x16x1xf32>
    %5 = vector.shape_cast %4 : vector<1x16x1xf32> to vector<16x1xf32>
    %c0_5 = arith.constant 0 : index
    %c0_6 = arith.constant 0 : index
    %c0_7 = arith.constant 0 : index
    %6 = vector.load %arg3[%c0_5, %c0_6, %c0_7] : memref<1x16x1xf32, #tpu.memory_space<vmem>>, vector<1x16x1xf32>
    %7 = vector.shape_cast %6 : vector<1x16x1xf32> to vector<16x1xf32>
    %cst = arith.constant dense<0.000000e+00> : vector<128xf32>
    %8 = vector.multi_reduction <add>, %3, %cst [0] : vector<16x128xf32> to vector<128xf32>
    %9 = vector.shape_cast %8 : vector<128xf32> to vector<1x128xf32>
    %cst_8 = arith.constant 1.600000e+01 : f32
    %10 = vector.broadcast %cst_8 : f32 to vector<1x128xf32>
    %11 = arith.divf %9, %10 : vector<1x128xf32>
    %12 = vector.broadcast %11 : vector<1x128xf32> to vector<16x128xf32>
    %13 = arith.subf %3, %12 : vector<16x128xf32>
    %14 = arith.mulf %13, %13 : vector<16x128xf32>
    %cst_9 = arith.constant dense<0.000000e+00> : vector<128xf32>
    %15 = vector.multi_reduction <add>, %14, %cst_9 [0] : vector<16x128xf32> to vector<128xf32>
    %16 = vector.shape_cast %15 : vector<128xf32> to vector<1x128xf32>
    %cst_10 = arith.constant 1.600000e+01 : f32
    %17 = vector.broadcast %cst_10 : f32 to vector<1x128xf32>
    %18 = arith.divf %16, %17 : vector<1x128xf32>
    %19 = vector.broadcast %11 : vector<1x128xf32> to vector<16x128xf32>
    %20 = arith.subf %3, %19 : vector<16x128xf32>
    %cst_11 = arith.constant 9.99999974E-6 : f32
    %21 = vector.broadcast %cst_11 : f32 to vector<1x128xf32>
    %22 = arith.addf %18, %21 : vector<1x128xf32>
    %23 = math.rsqrt %22 : vector<1x128xf32>
    %24 = vector.broadcast %23 : vector<1x128xf32> to vector<16x128xf32>
    %25 = arith.mulf %20, %24 : vector<16x128xf32>
    %26 = vector.broadcast %5 : vector<16x1xf32> to vector<16x128xf32>
    %27 = arith.mulf %25, %26 : vector<16x128xf32>
    %28 = vector.broadcast %7 : vector<16x1xf32> to vector<16x128xf32>
    %29 = arith.addf %27, %28 : vector<16x128xf32>
    %c0_12 = arith.constant 0 : index
    %c0_13 = arith.constant 0 : index
    %30 = vector.load %arg12[%c0_12, %c0_13] : memref<128x384xf32, #tpu.memory_space<vmem>>, vector<128x384xf32>
    %cst_14 = arith.constant dense<0.000000e+00> : vector<16x384xf32>
    %31 = tpu.matmul %29, %30, %cst_14 {dimension_numbers = #tpu.dot_dimension_numbers<[1], [0], [0], [1], [0, 0, 1, 1], [], []>} : vector<16x128xf32>, vector<128x384xf32>, vector<16x384xf32> -> vector<16x384xf32>
    %cst_15 = arith.constant -3.000000e+00 : f32
    %32 = vector.broadcast %cst_15 : f32 to vector<16x128xf32>
    %33 = arith.mulf %32, %29 : vector<16x128xf32>
    %c0_16 = arith.constant 0 : index
    %c0_17 = arith.constant 0 : index
    %c0_18 = arith.constant 0 : index
    %34 = vector.load %arg13[%c0_16, %c0_17, %c0_18] : memref<3x16x16xf32, #tpu.memory_space<vmem>>, vector<1x16x16xf32>
    %35 = vector.shape_cast %34 : vector<1x16x16xf32> to vector<16x16xf32>
    %36 = vector.extract_strided_slice %31 {offsets = [0, 0], sizes = [16, 128], strides = [1, 1]} : vector<16x384xf32> to vector<16x128xf32>
    %cst_19 = arith.constant dense<0.000000e+00> : vector<16x128xf32>
    %37 = tpu.matmul %35, %36, %cst_19 {dimension_numbers = #tpu.dot_dimension_numbers<[1], [0], [0], [1], [0, 0, 1, 1], [], []>} : vector<16x16xf32>, vector<16x128xf32>, vector<16x128xf32> -> vector<16x128xf32>
    %38 = arith.addf %33, %37 : vector<16x128xf32>
    %c1 = arith.constant 1 : index
    %c0_20 = arith.constant 0 : index
    %c0_21 = arith.constant 0 : index
    %39 = vector.load %arg13[%c1, %c0_20, %c0_21] : memref<3x16x16xf32, #tpu.memory_space<vmem>>, vector<1x16x16xf32>
    %40 = vector.shape_cast %39 : vector<1x16x16xf32> to vector<16x16xf32>
    %41 = vector.extract_strided_slice %31 {offsets = [0, 128], sizes = [16, 128], strides = [1, 1]} : vector<16x384xf32> to vector<16x128xf32>
    %cst_22 = arith.constant dense<0.000000e+00> : vector<16x128xf32>
    %42 = tpu.matmul %40, %41, %cst_22 {dimension_numbers = #tpu.dot_dimension_numbers<[1], [0], [0], [1], [0, 0, 1, 1], [], []>} : vector<16x16xf32>, vector<16x128xf32>, vector<16x128xf32> -> vector<16x128xf32>
    %43 = arith.addf %38, %42 : vector<16x128xf32>
    %c2 = arith.constant 2 : index
    %c0_23 = arith.constant 0 : index
    %c0_24 = arith.constant 0 : index
    %44 = vector.load %arg13[%c2, %c0_23, %c0_24] : memref<3x16x16xf32, #tpu.memory_space<vmem>>, vector<1x16x16xf32>
    %45 = vector.shape_cast %44 : vector<1x16x16xf32> to vector<16x16xf32>
    %46 = vector.extract_strided_slice %31 {offsets = [0, 256], sizes = [16, 128], strides = [1, 1]} : vector<16x384xf32> to vector<16x128xf32>
    %cst_25 = arith.constant dense<0.000000e+00> : vector<16x128xf32>
    %47 = tpu.matmul %45, %46, %cst_25 {dimension_numbers = #tpu.dot_dimension_numbers<[1], [0], [0], [1], [0, 0, 1, 1], [], []>} : vector<16x16xf32>, vector<16x128xf32>, vector<16x128xf32> -> vector<16x128xf32>
    %48 = arith.addf %43, %47 : vector<16x128xf32>
    %c0_26 = arith.constant 0 : index
    %c0_27 = arith.constant 0 : index
    %c0_28 = arith.constant 0 : index
    %49 = vector.load %arg4[%c0_26, %c0_27, %c0_28] : memref<1x16x16xf32, #tpu.memory_space<vmem>>, vector<1x16x16xf32>
    %50 = vector.shape_cast %49 : vector<1x16x16xf32> to vector<16x16xf32>
    %cst_29 = arith.constant dense<0.000000e+00> : vector<16x128xf32>
    %51 = tpu.matmul %50, %48, %cst_29 {dimension_numbers = #tpu.dot_dimension_numbers<[1], [0], [0], [1], [0, 0, 1, 1], [], []>} : vector<16x16xf32>, vector<16x128xf32>, vector<16x128xf32> -> vector<16x128xf32>
    %c0_30 = arith.constant 0 : index
    %c0_31 = arith.constant 0 : index
    %c0_32 = arith.constant 0 : index
    %52 = vector.load %arg5[%c0_30, %c0_31, %c0_32] : memref<1x16x1xf32, #tpu.memory_space<vmem>>, vector<1x16x1xf32>
    %53 = vector.shape_cast %52 : vector<1x16x1xf32> to vector<16x1xf32>
    %54 = vector.broadcast %53 : vector<16x1xf32> to vector<16x128xf32>
    %55 = arith.addf %51, %54 : vector<16x128xf32>
    %56 = arith.addf %55, %3 : vector<16x128xf32>
    %c0_33 = arith.constant 0 : index
    %c0_34 = arith.constant 0 : index
    %c0_35 = arith.constant 0 : index
    %57 = vector.load %arg6[%c0_33, %c0_34, %c0_35] : memref<1x16x1xf32, #tpu.memory_space<vmem>>, vector<1x16x1xf32>
    %58 = vector.shape_cast %57 : vector<1x16x1xf32> to vector<16x1xf32>
    %c0_36 = arith.constant 0 : index
    %c0_37 = arith.constant 0 : index
    %c0_38 = arith.constant 0 : index
    %59 = vector.load %arg7[%c0_36, %c0_37, %c0_38] : memref<1x16x1xf32, #tpu.memory_space<vmem>>, vector<1x16x1xf32>
    %60 = vector.shape_cast %59 : vector<1x16x1xf32> to vector<16x1xf32>
    %cst_39 = arith.constant dense<0.000000e+00> : vector<128xf32>
    %61 = vector.multi_reduction <add>, %56, %cst_39 [0] : vector<16x128xf32> to vector<128xf32>
    %62 = vector.shape_cast %61 : vector<128xf32> to vector<1x128xf32>
    %cst_40 = arith.constant 1.600000e+01 : f32
    %63 = vector.broadcast %cst_40 : f32 to vector<1x128xf32>
    %64 = arith.divf %62, %63 : vector<1x128xf32>
    %65 = vector.broadcast %64 : vector<1x128xf32> to vector<16x128xf32>
    %66 = arith.subf %56, %65 : vector<16x128xf32>
    %67 = arith.mulf %66, %66 : vector<16x128xf32>
    %cst_41 = arith.constant dense<0.000000e+00> : vector<128xf32>
    %68 = vector.multi_reduction <add>, %67, %cst_41 [0] : vector<16x128xf32> to vector<128xf32>
    %69 = vector.shape_cast %68 : vector<128xf32> to vector<1x128xf32>
    %cst_42 = arith.constant 1.600000e+01 : f32
    %70 = vector.broadcast %cst_42 : f32 to vector<1x128xf32>
    %71 = arith.divf %69, %70 : vector<1x128xf32>
    %72 = vector.broadcast %64 : vector<1x128xf32> to vector<16x128xf32>
    %73 = arith.subf %56, %72 : vector<16x128xf32>
    %cst_43 = arith.constant 9.99999974E-6 : f32
    %74 = vector.broadcast %cst_43 : f32 to vector<1x128xf32>
    %75 = arith.addf %71, %74 : vector<1x128xf32>
    %76 = math.rsqrt %75 : vector<1x128xf32>
    %77 = vector.broadcast %76 : vector<1x128xf32> to vector<16x128xf32>
    %78 = arith.mulf %73, %77 : vector<16x128xf32>
    %79 = vector.broadcast %58 : vector<16x1xf32> to vector<16x128xf32>
    %80 = arith.mulf %78, %79 : vector<16x128xf32>
    %81 = vector.broadcast %60 : vector<16x1xf32> to vector<16x128xf32>
    %82 = arith.addf %80, %81 : vector<16x128xf32>
    %c0_44 = arith.constant 0 : index
    %c0_45 = arith.constant 0 : index
    %c0_46 = arith.constant 0 : index
    %83 = vector.load %arg8[%c0_44, %c0_45, %c0_46] : memref<1x32x16xf32, #tpu.memory_space<vmem>>, vector<1x32x16xf32>
    %84 = vector.shape_cast %83 : vector<1x32x16xf32> to vector<32x16xf32>
    %cst_47 = arith.constant dense<0.000000e+00> : vector<32x128xf32>
    %85 = tpu.matmul %84, %82, %cst_47 {dimension_numbers = #tpu.dot_dimension_numbers<[1], [0], [0], [1], [0, 0, 1, 1], [], []>} : vector<32x16xf32>, vector<16x128xf32>, vector<32x128xf32> -> vector<32x128xf32>
    %c0_48 = arith.constant 0 : index
    %c0_49 = arith.constant 0 : index
    %c0_50 = arith.constant 0 : index
    %86 = vector.load %arg9[%c0_48, %c0_49, %c0_50] : memref<1x32x1xf32, #tpu.memory_space<vmem>>, vector<1x32x1xf32>
    %87 = vector.shape_cast %86 : vector<1x32x1xf32> to vector<32x1xf32>
    %88 = vector.broadcast %87 : vector<32x1xf32> to vector<32x128xf32>
    %89 = arith.addf %85, %88 : vector<32x128xf32>
    %cst_51 = arith.constant 5.000000e-01 : f32
    %90 = vector.broadcast %cst_51 : f32 to vector<32x128xf32>
    %91 = arith.mulf %90, %89 : vector<32x128xf32>
    %cst_52 = arith.constant 0.707106769 : f32
    %92 = vector.broadcast %cst_52 : f32 to vector<32x128xf32>
    %93 = arith.mulf %89, %92 : vector<32x128xf32>
    %94 = math.erf %93 : vector<32x128xf32>
    %cst_53 = arith.constant 1.000000e+00 : f32
    %95 = vector.broadcast %cst_53 : f32 to vector<32x128xf32>
    %96 = arith.addf %95, %94 : vector<32x128xf32>
    %97 = arith.mulf %91, %96 : vector<32x128xf32>
    %c0_54 = arith.constant 0 : index
    %c0_55 = arith.constant 0 : index
    %c0_56 = arith.constant 0 : index
    %98 = vector.load %arg10[%c0_54, %c0_55, %c0_56] : memref<1x16x32xf32, #tpu.memory_space<vmem>>, vector<1x16x32xf32>
    %99 = vector.shape_cast %98 : vector<1x16x32xf32> to vector<16x32xf32>
    %cst_57 = arith.constant dense<0.000000e+00> : vector<16x128xf32>
    %100 = tpu.matmul %99, %97, %cst_57 {dimension_numbers = #tpu.dot_dimension_numbers<[1], [0], [0], [1], [0, 0, 1, 1], [], []>} : vector<16x32xf32>, vector<32x128xf32>, vector<16x128xf32> -> vector<16x128xf32>
    %c0_58 = arith.constant 0 : index
    %c0_59 = arith.constant 0 : index
    %c0_60 = arith.constant 0 : index
    %101 = vector.load %arg11[%c0_58, %c0_59, %c0_60] : memref<1x16x1xf32, #tpu.memory_space<vmem>>, vector<1x16x1xf32>
    %102 = vector.shape_cast %101 : vector<1x16x1xf32> to vector<16x1xf32>
    %103 = vector.broadcast %102 : vector<16x1xf32> to vector<16x128xf32>
    %104 = arith.addf %100, %103 : vector<16x128xf32>
    %105 = arith.addf %104, %56 : vector<16x128xf32>
    %c0_61 = arith.constant 0 : index
    %c0_62 = arith.constant 0 : index
    %106 = vector.load %arg14[%c0_61, %c0_62] : memref<16x128xf32, #tpu.memory_space<vmem>>, vector<16x128xf32>
    tpu.vector_store %arg14[%c0_61, %c0_62], %105 {strides = array<i32>} : memref<16x128xf32, #tpu.memory_space<vmem>>, vector<16x128xf32>,
    return
  }
  func.func @transform_0(%arg0: i32) -> (i32, i32) {
    %c0_i32 = arith.constant 0 : i32
    %c0_i32_0 = arith.constant 0 : i32
    %c0_i32_1 = arith.constant 0 : i32
    return %c0_i32, %c0_i32_0 : i32, i32
  }
  func.func @transform_1(%arg0: i32) -> (i32, i32, i32) {
    %c0_i32 = arith.constant 0 : i32
    %c0_i32_0 = arith.constant 0 : i32
    %c0_i32_1 = arith.constant 0 : i32
    return %arg0, %c0_i32, %c0_i32_0 : i32, i32, i32
  }
  func.func @transform_2(%arg0: i32) -> (i32, i32, i32) {
    %c0_i32 = arith.constant 0 : i32
    %c0_i32_0 = arith.constant 0 : i32
    %c0_i32_1 = arith.constant 0 : i32
    return %arg0, %c0_i32, %c0_i32_0 : i32, i32, i32
  }
  func.func @transform_3(%arg0: i32) -> (i32, i32, i32) {
    %c0_i32 = arith.constant 0 : i32
    %c0_i32_0 = arith.constant 0 : i32
    %c0_i32_1 = arith.constant 0 : i32
    return %arg0, %c0_i32, %c0_i32_0 : i32, i32, i32
  }
  func.func @transform_4(%arg0: i32) -> (i32, i32, i32) {
    %c0_i32 = arith.constant 0 : i32
    %c0_i32_0 = arith.constant 0 : i32
    %c0_i32_1 = arith.constant 0 : i32
    return %arg0, %c0_i32, %c0_i32_0 : i32, i32, i32
  }
  func.func @transform_5(%arg0: i32) -> (i32, i32, i32) {
    %c0_i32 = arith.constant 0 : i32
    %c0_i32_0 = arith.constant 0 : i32
    %c0_i32_1 = arith.constant 0 : i32
    return %arg0, %c0_i32, %c0_i32_0 : i32, i32, i32
  }
  func.func @transform_6(%arg0: i32) -> (i32, i32, i32) {
    %c0_i32 = arith.constant 0 : i32
    %c0_i32_0 = arith.constant 0 : i32
    %c0_i32_1 = arith.constant 0 : i32
    return %arg0, %c0_i32, %c0_i32_0 : i32, i32, i32
  }
  func.func @transform_7(%arg0: i32) -> (i32, i32, i32) {
    %c0_i32 = arith.constant 0 : i32
    %c0_i32_0 = arith.constant 0 : i32
    %c0_i32_1 = arith.constant 0 : i32
    return %arg0, %c0_i32, %c0_i32_0 : i32, i32, i32
  }
  func.func @transform_8(%arg0: i32) -> (i32, i32, i32) {
    %c0_i32 = arith.constant 0 : i32
    %c0_i32_0 = arith.constant 0 : i32
    %c0_i32_1 = arith.constant 0 : i32
    return %arg0, %c0_i32, %c0_i32_0 : i32, i32, i32
  }
  func.func @transform_9(%arg0: i32) -> (i32, i32, i32) {
    %c0_i32 = arith.constant 0 : i32
    %c0_i32_0 = arith.constant 0 : i32
    %c0_i32_1 = arith.constant 0 : i32
    return %arg0, %c0_i32, %c0_i32_0 : i32, i32, i32
  }
  func.func @transform_10(%arg0: i32) -> (i32, i32, i32) {
    %c0_i32 = arith.constant 0 : i32
    %c0_i32_0 = arith.constant 0 : i32
    %c0_i32_1 = arith.constant 0 : i32
    return %arg0, %c0_i32, %c0_i32_0 : i32, i32, i32
  }
  func.func @transform_11(%arg0: i32) -> (i32, i32) {
    %c0_i32 = arith.constant 0 : i32
    %c0_i32_0 = arith.constant 0 : i32
    %c0_i32_1 = arith.constant 0 : i32
    return %c0_i32, %c0_i32_0 : i32, i32
  }
  func.func @transform_12(%arg0: i32) -> (i32, i32, i32) {
    %c0_i32 = arith.constant 0 : i32
    %c0_i32_0 = arith.constant 0 : i32
    %c0_i32_1 = arith.constant 0 : i32
    %c0_i32_2 = arith.constant 0 : i32
    return %c0_i32, %c0_i32_0, %c0_i32_1 : i32, i32, i32
  }
  func.func @transform_13(%arg0: i32) -> (i32, i32) {
    %c0_i32 = arith.constant 0 : i32
    %c0_i32_0 = arith.constant 0 : i32
    %c0_i32_1 = arith.constant 0 : i32
    return %c0_i32, %c0_i32_0 : i32, i32
  }
}

</mosaic_0001>

<llo_original>
// kernel: transformer_forward.1
$region0: #{transformer_forward.1}
  #allocation0 [shape = 'u32[]', space=smem, size = 0x4, offset = 0x4, fixed_abs, tag = 'smem constant byte address 0x4 - core index']
  #allocation1 [shape = 'u32[72,128]{1,0:T(1,128)}', space=vmem, size = 0x9000, scoped, tag = 'internal scratch']
  %s0 = inlined_call_operand.vmem [shape: f32[16,128], index: 0, kind: input, shape index: {}]
  %s1 = inlined_call_operand.vmem [shape: f32[2,16,1], index: 1, kind: input, shape index: {}]
  %s2 = inlined_call_operand.vmem [shape: f32[2,16,1], index: 2, kind: input, shape index: {}]
  %s3 = inlined_call_operand.vmem [shape: f32[2,16,16], index: 3, kind: input, shape index: {}]
  %s4 = inlined_call_operand.vmem [shape: f32[2,16,1], index: 4, kind: input, shape index: {}]
  %s5 = inlined_call_operand.vmem [shape: f32[2,16,1], index: 5, kind: input, shape index: {}]
  %s6 = inlined_call_operand.vmem [shape: f32[2,16,1], index: 6, kind: input, shape index: {}]
  %s7 = inlined_call_operand.vmem [shape: f32[2,32,16], index: 7, kind: input, shape index: {}]
  %s8 = inlined_call_operand.vmem [shape: f32[2,32,1], index: 8, kind: input, shape index: {}]
  %s9 = inlined_call_operand.vmem [shape: f32[2,16,32], index: 9, kind: input, shape index: {}]
  %s10 = inlined_call_operand.vmem [shape: f32[2,16,1], index: 10, kind: input, shape index: {}]
  %s11 = inlined_call_operand.hbm [shape: f32[128,384], index: 11, kind: input, shape index: {}]
  %s12 = inlined_call_operand.vmem [shape: f32[3,16,16], index: 12, kind: input, shape index: {}]
  %s13 = inlined_call_operand.vmem [shape: f32[16,128], index: 13, kind: output, shape index: {}]
  %s14 = sld [smem:[#allocation0]]
  $region93: #{transformer_forward.1} parent=0
    _
  %s16 = ssub.s32 1, %s14
  %s17 = scalar_select 0, %s16, %s14
  $region1: #{transformer_forward.1} parent=0
    #allocation2 [shape = 'u8[196608]{0}', space=vmem, size = 0x30000, scoped, tag = 'input window, operand 11, single buffered']
    #allocation3 [shape = 's32[2]{0}', space=sflag, size = 0x8, scoped, tag = 'scoped memory for transformer_forward.1']
    %18 = vsyncpa [#allocation3], 0
    loop: start=0, step=1, limit=4
    $region2: #{transformer_forward.1} parent=1 // loop_pre_header
      _
    $region3: #{transformer_forward.1} parent=1 // loop_header
      %s20 = sphi 0, %s24
      %p21 = scmp.ge.s32.totalorder %s20, 4
      %s28 = sphi 0, %s28
      %s30 = sphi 0, %s28
      %s31 = sphi 0, %s30
      %s45 = sphi 0, %s31
      %s51 = sphi 0, %s53
      %s54 = sphi 0, %s51
      %s55 = sphi 0, %s54
      %s71 = sphi 0, %s55
      %s77 = sphi 0, %s79
      %s80 = sphi 0, %s77
      %s81 = sphi 0, %s80
      %s97 = sphi 0, %s81
      %s103 = sphi 0, %s105
      %s106 = sphi 0, %s103
      %s107 = sphi 0, %s106
      %s123 = sphi 0, %s107
      %s129 = sphi 0, %s131
      %s132 = sphi 0, %s129
      %s133 = sphi 0, %s132
      %s149 = sphi 0, %s133
      %s155 = sphi 0, %s157
      %s158 = sphi 0, %s155
      %s159 = sphi 0, %s158
      %s175 = sphi 0, %s159
      %s181 = sphi 0, %s183
      %s184 = sphi 0, %s181
      %s185 = sphi 0, %s184
      %s201 = sphi 0, %s185
      %s207 = sphi 0, %s209
      %s210 = sphi 0, %s207
      %s211 = sphi 0, %s210
      %s227 = sphi 0, %s211
      %s233 = sphi 0, %s235
      %s236 = sphi 0, %s233
      %s237 = sphi 0, %s236
      %s253 = sphi 0, %s237
      %s259 = sphi 0, %s261
      %s262 = sphi 0, %s259
      %s263 = sphi 0, %s262
      %s279 = sphi 0, %s263
      %s285 = sphi 0, %s287
      %s288 = sphi 0, %s285
      %s289 = sphi 0, %s288
      %s305 = sphi 0, %s289
      %s309 = sphi 0, %s309
      %s311 = sphi 0, %s309
      %s312 = sphi 0, %s311
      %s326 = sphi 0, %s312
      %s330 = sphi 0, %s330
      %s332 = sphi 0, %s330
      %s333 = sphi 0, %s332
      %s347 = sphi 0, %s333
      %s351 = sphi 0, %s351
      %s353 = sphi 0, %s351
      %s354 = sphi 0, %s353
      %s368 = sphi 0, %s354
    $region4: #{transformer_forward.1} parent=1 // loop_header_branch
      %23 = sbr.rel (%p21) target = $region8
    $region5: #{transformer_forward.1} parent=1 // loop_body
      %s25 = ssub.s32 %s20, 1
      %s26 = ssub.s32 %s20, 2
      %s27 = sadd.s32 %s20, 1
      %s29 = sadd.s32 %s28, 1
      %p32 = scmp.eq.s32.totalorder %s20, 1
      %p33 = scmp.ne.s32.totalorder %s28, %s30
      %p34 = scmp.eq.s32.totalorder %s20, 0
      %p35 = por %p33, %p34
      %p36 = scmp.ne.s32.totalorder %s28, %s30
      %p37 = scmp.eq.s32.totalorder %s25, 1
      %p38 = por %p36, %p37
      %p39 = scmp.ne.s32.totalorder %s30, %s31
      %p40 = scmp.eq.s32.totalorder %s25, 0
      %p41 = por %p39, %p40
      %p42 = scmp.ne.s32.totalorder %s30, %s31
      %p43 = scmp.eq.s32.totalorder %s26, 1
      %p44 = por %p42, %p43
      %p46 = scmp.ne.s32.totalorder %s31, %s45
      %p47 = scmp.eq.s32.totalorder %s26, 0
      %p48 = por %p46, %p47
      %s49 = ssub.s32 %s20, %s27
      %p50 = scmp.eq.s32.totalorder %s49, 0
      %s52 = sadd.s32 %s51, 1
      %s53 = scalar_select %p50, %s51, %s52
      %p56 = pneg %p50
      %p57 = scmp.eq.s32.totalorder %s20, 1
      %p58 = por %p56, %p57
      %p59 = scmp.ne.s32.totalorder %s51, %s54
      %p60 = scmp.eq.s32.totalorder %s20, 0
      %p61 = por %p59, %p60
      %p62 = scmp.ne.s32.totalorder %s51, %s54
      %p63 = scmp.eq.s32.totalorder %s25, 1
      %p64 = por %p62, %p63
      %p65 = scmp.ne.s32.totalorder %s54, %s55
      %p66 = scmp.eq.s32.totalorder %s25, 0
      %p67 = por %p65, %p66
      %p68 = scmp.ne.s32.totalorder %s54, %s55
      %p69 = scmp.eq.s32.totalorder %s26, 1
      %p70 = por %p68, %p69
      %p72 = scmp.ne.s32.totalorder %s55, %s71
      %p73 = scmp.eq.s32.totalorder %s26, 0
      %p74 = por %p72, %p73
      %s75 = ssub.s32 %s20, %s27
      %p76 = scmp.eq.s32.totalorder %s75, 0
      %s78 = sadd.s32 %s77, 1
      %s79 = scalar_select %p76, %s77, %s78
      %p82 = pneg %p76
      %p83 = scmp.eq.s32.totalorder %s20, 1
      %p84 = por %p82, %p83
      %p85 = scmp.ne.s32.totalorder %s77, %s80
      %p86 = scmp.eq.s32.totalorder %s20, 0
      %p87 = por %p85, %p86
      %p88 = scmp.ne.s32.totalorder %s77, %s80
      %p89 = scmp.eq.s32.totalorder %s25, 1
      %p90 = por %p88, %p89
      %p91 = scmp.ne.s32.totalorder %s80, %s81
      %p92 = scmp.eq.s32.totalorder %s25, 0
      %p93 = por %p91, %p92
      %p94 = scmp.ne.s32.totalorder %s80, %s81
      %p95 = scmp.eq.s32.totalorder %s26, 1
      %p96 = por %p94, %p95
      %p98 = scmp.ne.s32.totalorder %s81, %s97
      %p99 = scmp.eq.s32.totalorder %s26, 0
      %p100 = por %p98, %p99
      %s101 = ssub.s32 %s20, %s27
      %p102 = scmp.eq.s32.totalorder %s101, 0
      %s104 = sadd.s32 %s103, 1
      %s105 = scalar_select %p102, %s103, %s104
      %p108 = pneg %p102
      %p109 = scmp.eq.s32.totalorder %s20, 1
      %p110 = por %p108, %p109
      %p111 = scmp.ne.s32.totalorder %s103, %s106
      %p112 = scmp.eq.s32.totalorder %s20, 0
      %p113 = por %p111, %p112
      %p114 = scmp.ne.s32.totalorder %s103, %s106
      %p115 = scmp.eq.s32.totalorder %s25, 1
      %p116 = por %p114, %p115
      %p117 = scmp.ne.s32.totalorder %s106, %s107
      %p118 = scmp.eq.s32.totalorder %s25, 0
      %p119 = por %p117, %p118
      %p120 = scmp.ne.s32.totalorder %s106, %s107
      %p121 = scmp.eq.s32.totalorder %s26, 1
      %p122 = por %p120, %p121
      %p124 = scmp.ne.s32.totalorder %s107, %s123
      %p125 = scmp.eq.s32.totalorder %s26, 0
      %p126 = por %p124, %p125
      %s127 = ssub.s32 %s20, %s27
      %p128 = scmp.eq.s32.totalorder %s127, 0
      %s130 = sadd.s32 %s129, 1
      %s131 = scalar_select %p128, %s129, %s130
      %p134 = pneg %p128
      %p135 = scmp.eq.s32.totalorder %s20, 1
      %p136 = por %p134, %p135
      %p137 = scmp.ne.s32.totalorder %s129, %s132
      %p138 = scmp.eq.s32.totalorder %s20, 0
      %p139 = por %p137, %p138
      %p140 = scmp.ne.s32.totalorder %s129, %s132
      %p141 = scmp.eq.s32.totalorder %s25, 1
      %p142 = por %p140, %p141
      %p143 = scmp.ne.s32.totalorder %s132, %s133
      %p144 = scmp.eq.s32.totalorder %s25, 0
      %p145 = por %p143, %p144
      %p146 = scmp.ne.s32.totalorder %s132, %s133
      %p147 = scmp.eq.s32.totalorder %s26, 1
      %p148 = por %p146, %p147
      %p150 = scmp.ne.s32.totalorder %s133, %s149
      %p151 = scmp.eq.s32.totalorder %s26, 0
      %p152 = por %p150, %p151
      %s153 = ssub.s32 %s20, %s27
      %p154 = scmp.eq.s32.totalorder %s153, 0
      %s156 = sadd.s32 %s155, 1
      %s157 = scalar_select %p154, %s155, %s156
      %p160 = pneg %p154
      %p161 = scmp.eq.s32.totalorder %s20, 1
      %p162 = por %p160, %p161
      %p163 = scmp.ne.s32.totalorder %s155, %s158
      %p164 = scmp.eq.s32.totalorder %s20, 0
      %p165 = por %p163, %p164
      %p166 = scmp.ne.s32.totalorder %s155, %s158
      %p167 = scmp.eq.s32.totalorder %s25, 1
      %p168 = por %p166, %p167
      %p169 = scmp.ne.s32.totalorder %s158, %s159
      %p170 = scmp.eq.s32.totalorder %s25, 0
      %p171 = por %p169, %p170
      %p172 = scmp.ne.s32.totalorder %s158, %s159
      %p173 = scmp.eq.s32.totalorder %s26, 1
      %p174 = por %p172, %p173
      %p176 = scmp.ne.s32.totalorder %s159, %s175
      %p177 = scmp.eq.s32.totalorder %s26, 0
      %p178 = por %p176, %p177
      %s179 = ssub.s32 %s20, %s27
      %p180 = scmp.eq.s32.totalorder %s179, 0
      %s182 = sadd.s32 %s181, 1
      %s183 = scalar_select %p180, %s181, %s182
      %p186 = pneg %p180
      %p187 = scmp.eq.s32.totalorder %s20, 1
      %p188 = por %p186, %p187
      %p189 = scmp.ne.s32.totalorder %s181, %s184
      %p190 = scmp.eq.s32.totalorder %s20, 0
      %p191 = por %p189, %p190
      %p192 = scmp.ne.s32.totalorder %s181, %s184
      %p193 = scmp.eq.s32.totalorder %s25, 1
      %p194 = por %p192, %p193
      %p195 = scmp.ne.s32.totalorder %s184, %s185
      %p196 = scmp.eq.s32.totalorder %s25, 0
      %p197 = por %p195, %p196
      %p198 = scmp.ne.s32.totalorder %s184, %s185
      %p199 = scmp.eq.s32.totalorder %s26, 1
      %p200 = por %p198, %p199
      %p202 = scmp.ne.s32.totalorder %s185, %s201
      %p203 = scmp.eq.s32.totalorder %s26, 0
      %p204 = por %p202, %p203
      %s205 = ssub.s32 %s20, %s27
      %p206 = scmp.eq.s32.totalorder %s205, 0
      %s208 = sadd.s32 %s207, 1
      %s209 = scalar_select %p206, %s207, %s208
      %p212 = pneg %p206
      %p213 = scmp.eq.s32.totalorder %s20, 1
      %p214 = por %p212, %p213
      %p215 = scmp.ne.s32.totalorder %s207, %s210
      %p216 = scmp.eq.s32.totalorder %s20, 0
      %p217 = por %p215, %p216
      %p218 = scmp.ne.s32.totalorder %s207, %s210
      %p219 = scmp.eq.s32.totalorder %s25, 1
      %p220 = por %p218, %p219
      %p221 = scmp.ne.s32.totalorder %s210, %s211
      %p222 = scmp.eq.s32.totalorder %s25, 0
      %p223 = por %p221, %p222
      %p224 = scmp.ne.s32.totalorder %s210, %s211
      %p225 = scmp.eq.s32.totalorder %s26, 1
      %p226 = por %p224, %p225
      %p228 = scmp.ne.s32.totalorder %s211, %s227
      %p229 = scmp.eq.s32.totalorder %s26, 0
      %p230 = por %p228, %p229
      %s231 = ssub.s32 %s20, %s27
      %p232 = scmp.eq.s32.totalorder %s231, 0
      %s234 = sadd.s32 %s233, 1
      %s235 = scalar_select %p232, %s233, %s234
      %p238 = pneg %p232
      %p239 = scmp.eq.s32.totalorder %s20, 1
      %p240 = por %p238, %p239
      %p241 = scmp.ne.s32.totalorder %s233, %s236
      %p242 = scmp.eq.s32.totalorder %s20, 0
      %p243 = por %p241, %p242
      %p244 = scmp.ne.s32.totalorder %s233, %s236
      %p245 = scmp.eq.s32.totalorder %s25, 1
      %p246 = por %p244, %p245
      %p247 = scmp.ne.s32.totalorder %s236, %s237
      %p248 = scmp.eq.s32.totalorder %s25, 0
      %p249 = por %p247, %p248
      %p250 = scmp.ne.s32.totalorder %s236, %s237
      %p251 = scmp.eq.s32.totalorder %s26, 1
      %p252 = por %p250, %p251
      %p254 = scmp.ne.s32.totalorder %s237, %s253
      %p255 = scmp.eq.s32.totalorder %s26, 0
      %p256 = por %p254, %p255
      %s257 = ssub.s32 %s20, %s27
      %p258 = scmp.eq.s32.totalorder %s257, 0
      %s260 = sadd.s32 %s259, 1
      %s261 = scalar_select %p258, %s259, %s260
      %p264 = pneg %p258
      %p265 = scmp.eq.s32.totalorder %s20, 1
      %p266 = por %p264, %p265
      %p267 = scmp.ne.s32.totalorder %s259, %s262
      %p268 = scmp.eq.s32.totalorder %s20, 0
      %p269 = por %p267, %p268
      %p270 = scmp.ne.s32.totalorder %s259, %s262
      %p271 = scmp.eq.s32.totalorder %s25, 1
      %p272 = por %p270, %p271
      %p273 = scmp.ne.s32.totalorder %s262, %s263
      %p274 = scmp.eq.s32.totalorder %s25, 0
      %p275 = por %p273, %p274
      %p276 = scmp.ne.s32.totalorder %s262, %s263
      %p277 = scmp.eq.s32.totalorder %s26, 1
      %p278 = por %p276, %p277
      %p280 = scmp.ne.s32.totalorder %s263, %s279
      %p281 = scmp.eq.s32.totalorder %s26, 0
      %p282 = por %p280, %p281
      %s283 = ssub.s32 %s20, %s27
      %p284 = scmp.eq.s32.totalorder %s283, 0
      %s286 = sadd.s32 %s285, 1
      %s287 = scalar_select %p284, %s285, %s286
      %p290 = pneg %p284
      %p291 = scmp.eq.s32.totalorder %s20, 1
      %p292 = por %p290, %p291
      %p293 = scmp.ne.s32.totalorder %s285, %s288
      %p294 = scmp.eq.s32.totalorder %s20, 0
      %p295 = por %p293, %p294
      %p296 = scmp.ne.s32.totalorder %s285, %s288
      %p297 = scmp.eq.s32.totalorder %s25, 1
      %p298 = por %p296, %p297
      %p299 = scmp.ne.s32.totalorder %s288, %s289
      %p300 = scmp.eq.s32.totalorder %s25, 0
      %p301 = por %p299, %p300
      %p302 = scmp.ne.s32.totalorder %s288, %s289
      %p303 = scmp.eq.s32.totalorder %s26, 1
      %p304 = por %p302, %p303
      %p306 = scmp.ne.s32.totalorder %s289, %s305
      %p307 = scmp.eq.s32.totalorder %s26, 0
      %p308 = por %p306, %p307
      %s310 = sadd.s32 %s309, 1
      %p313 = scmp.eq.s32.totalorder %s20, 1
      %p314 = scmp.ne.s32.totalorder %s309, %s311
      %p315 = scmp.eq.s32.totalorder %s20, 0
      %p316 = por %p314, %p315
      %p317 = scmp.ne.s32.totalorder %s309, %s311
      %p318 = scmp.eq.s32.totalorder %s25, 1
      %p319 = por %p317, %p318
      %p320 = scmp.ne.s32.totalorder %s311, %s312
      %p321 = scmp.eq.s32.totalorder %s25, 0
      %p322 = por %p320, %p321
      %p323 = scmp.ne.s32.totalorder %s311, %s312
      %p324 = scmp.eq.s32.totalorder %s26, 1
      %p325 = por %p323, %p324
      %p327 = scmp.ne.s32.totalorder %s312, %s326
      %p328 = scmp.eq.s32.totalorder %s26, 0
      %p329 = por %p327, %p328
      %s331 = sadd.s32 %s330, 1
      %p334 = scmp.eq.s32.totalorder %s20, 1
      %p335 = scmp.ne.s32.totalorder %s330, %s332
      %p336 = scmp.eq.s32.totalorder %s20, 0
      %p337 = por %p335, %p336
      %p338 = scmp.ne.s32.totalorder %s330, %s332
      %p339 = scmp.eq.s32.totalorder %s25, 1
      %p340 = por %p338, %p339
      %p341 = scmp.ne.s32.totalorder %s332, %s333
      %p342 = scmp.eq.s32.totalorder %s25, 0
      %p343 = por %p341, %p342
      %p344 = scmp.ne.s32.totalorder %s332, %s333
      %p345 = scmp.eq.s32.totalorder %s26, 1
      %p346 = por %p344, %p345
      %p348 = scmp.ne.s32.totalorder %s333, %s347
      %p349 = scmp.eq.s32.totalorder %s26, 0
      %p350 = por %p348, %p349
      %s352 = sadd.s32 %s351, 1
      %p355 = scmp.eq.s32.totalorder %s20, 1
      %p356 = scmp.ne.s32.totalorder %s351, %s353
      %p357 = scmp.eq.s32.totalorder %s20, 0
      %p358 = por %p356, %p357
      %p359 = scmp.ne.s32.totalorder %s351, %s353
      %p360 = scmp.eq.s32.totalorder %s25, 1
      %p361 = por %p359, %p360
      %p362 = scmp.ne.s32.totalorder %s353, %s354
      %p363 = scmp.eq.s32.totalorder %s25, 0
      %p364 = por %p362, %p363
      %p365 = scmp.ne.s32.totalorder %s353, %s354
      %p366 = scmp.eq.s32.totalorder %s26, 1
      %p367 = por %p365, %p366
      %p369 = scmp.ne.s32.totalorder %s354, %s368
      %p370 = scmp.eq.s32.totalorder %s26, 0
      %p371 = por %p369, %p370
      %p372 = scmp.le.s32.totalorder 1, %s20
      %p373 = scmp.lt.s32.totalorder %s20, 3
      %p374 = pnand %p372, %p373
      %p375 = pneg %p374
      // Predicated region
      $region9: #{transformer_forward.1} parent=5 // pred_check
        _
      $region10: #{transformer_forward.1} parent=5 // pred_check_branch
        %377 = sbr.rel (%p374) target = $region12
      $region11: #{transformer_forward.1} parent=5 // pred_region
        %s378 = ssub.s32 %s20, 1
        // Predicated region
        $region13: #{transformer_forward.1} parent=11 // pred_check
          %p379 = pneg %p41
        $region14: #{transformer_forward.1} parent=11 // pred_check_branch
          %381 = sbr.rel (%p379) target = $region16
        $region15: #{transformer_forward.1} parent=11 // pred_region
          _
        $region16: #{transformer_forward.1} parent=11 // pred_fallthru
          _
        // Predicated region
        $region17: #{transformer_forward.1} parent=11 // pred_check
          %p382 = pneg %p322
        $region18: #{transformer_forward.1} parent=11 // pred_check_branch
          %384 = sbr.rel (%p382) target = $region20
        $region19: #{transformer_forward.1} parent=11 // pred_region
          %386 = vsyncadd [#allocation3], 0
          %s387 = sshll.u32 %s11, 4
          %s388 = int_to_ptr.hbm [resolvable:$true] %s387
          %s389 = sshll.u32 [#allocation2], 4
          %s390 = int_to_ptr.vmem [resolvable:$true] %s389
          %395 = dma.hbm_to_vmem [thread:$0]  %s388, 6144, %s390, [#allocation3], 384, 384, 24
        $region20: #{transformer_forward.1} parent=11 // pred_fallthru
          _
        // Predicated region
        $region21: #{transformer_forward.1} parent=11 // pred_check
          %p396 = pneg %p343
        $region22: #{transformer_forward.1} parent=11 // pred_check_branch
          %398 = sbr.rel (%p396) target = $region24
        $region23: #{transformer_forward.1} parent=11 // pred_region
          _
        $region24: #{transformer_forward.1} parent=11 // pred_fallthru
          _
      $region12: #{transformer_forward.1} parent=5 // pred_fallthru
        _
      %p399 = scmp.lt.s32.totalorder %s20, 2
      // Predicated region
      $region25: #{transformer_forward.1} parent=5 // pred_check
        %p400 = pneg %p399
      $region26: #{transformer_forward.1} parent=5 // pred_check_branch
        %402 = sbr.rel (%p400) target = $region28
      $region27: #{transformer_forward.1} parent=5 // pred_region
        // Predicated region
        $region29: #{transformer_forward.1} parent=27 // pred_check
          %p403 = pneg %p61
        $region30: #{transformer_forward.1} parent=27 // pred_check_branch
          %405 = sbr.rel (%p403) target = $region32
        $region31: #{transformer_forward.1} parent=27 // pred_region
          %p406 = scmp.lt.s32.totalorder %s20, 1
          %s407 = scalar_select %p406, %s20, 1
          %s408 = smul.addr %s407, 2
          %s409 = smul.addr %s408, 8
          %s410 = scalar_lea.vmem %s1, %s409
        $region32: #{transformer_forward.1} parent=27 // pred_fallthru
          _
        // Predicated region
        $region33: #{transformer_forward.1} parent=27 // pred_check
          %p411 = pneg %p87
        $region34: #{transformer_forward.1} parent=27 // pred_check_branch
          %413 = sbr.rel (%p411) target = $region36
        $region35: #{transformer_forward.1} parent=27 // pred_region
          %p414 = scmp.lt.s32.totalorder %s20, 1
          %s415 = scalar_select %p414, %s20, 1
          %s416 = smul.addr %s415, 2
          %s417 = smul.addr %s416, 8
          %s418 = scalar_lea.vmem %s2, %s417
        $region36: #{transformer_forward.1} parent=27 // pred_fallthru
          _
        // Predicated region
        $region37: #{transformer_forward.1} parent=27 // pred_check
          %p419 = pneg %p113
        $region38: #{transformer_forward.1} parent=27 // pred_check_branch
          %421 = sbr.rel (%p419) target = $region40
        $region39: #{transformer_forward.1} parent=27 // pred_region
          %p422 = scmp.lt.s32.totalorder %s20, 1
          %s423 = scalar_select %p422, %s20, 1
          %s424 = smul.addr %s423, 2
          %s425 = smul.addr %s424, 8
          %s426 = scalar_lea.vmem %s3, %s425
        $region40: #{transformer_forward.1} parent=27 // pred_fallthru
          _
        // Predicated region
        $region41: #{transformer_forward.1} parent=27 // pred_check
          %p427 = pneg %p139
        $region42: #{transformer_forward.1} parent=27 // pred_check_branch
          %429 = sbr.rel (%p427) target = $region44
        $region43: #{transformer_forward.1} parent=27 // pred_region
          %p430 = scmp.lt.s32.totalorder %s20, 1
          %s431 = scalar_select %p430, %s20, 1
          %s432 = smul.addr %s431, 2
          %s433 = smul.addr %s432, 8
          %s434 = scalar_lea.vmem %s4, %s433
        $region44: #{transformer_forward.1} parent=27 // pred_fallthru
          _
        // Predicated region
        $region45: #{transformer_forward.1} parent=27 // pred_check
          %p435 = pneg %p165
        $region46: #{transformer_forward.1} parent=27 // pred_check_branch
          %437 = sbr.rel (%p435) target = $region48
        $region47: #{transformer_forward.1} parent=27 // pred_region
          %p438 = scmp.lt.s32.totalorder %s20, 1
          %s439 = scalar_select %p438, %s20, 1
          %s440 = smul.addr %s439, 2
          %s441 = smul.addr %s440, 8
          %s442 = scalar_lea.vmem %s5, %s441
        $region48: #{transformer_forward.1} parent=27 // pred_fallthru
          _
        // Predicated region
        $region49: #{transformer_forward.1} parent=27 // pred_check
          %p443 = pneg %p191
        $region50: #{transformer_forward.1} parent=27 // pred_check_branch
          %445 = sbr.rel (%p443) target = $region52
        $region51: #{transformer_forward.1} parent=27 // pred_region
          %p446 = scmp.lt.s32.totalorder %s20, 1
          %s447 = scalar_select %p446, %s20, 1
          %s448 = smul.addr %s447, 2
          %s449 = smul.addr %s448, 8
          %s450 = scalar_lea.vmem %s6, %s449
        $region52: #{transformer_forward.1} parent=27 // pred_fallthru
          _
        // Predicated region
        $region53: #{transformer_forward.1} parent=27 // pred_check
          %p451 = pneg %p217
        $region54: #{transformer_forward.1} parent=27 // pred_check_branch
          %453 = sbr.rel (%p451) target = $region56
        $region55: #{transformer_forward.1} parent=27 // pred_region
          %p454 = scmp.lt.s32.totalorder %s20, 1
          %s455 = scalar_select %p454, %s20, 1
          %s456 = smul.addr %s455, 4
          %s457 = smul.addr %s456, 8
          %s458 = scalar_lea.vmem %s7, %s457
        $region56: #{transformer_forward.1} parent=27 // pred_fallthru
          _
        // Predicated region
        $region57: #{transformer_forward.1} parent=27 // pred_check
          %p459 = pneg %p243
        $region58: #{transformer_forward.1} parent=27 // pred_check_branch
          %461 = sbr.rel (%p459) target = $region60
        $region59: #{transformer_forward.1} parent=27 // pred_region
          %p462 = scmp.lt.s32.totalorder %s20, 1
          %s463 = scalar_select %p462, %s20, 1
          %s464 = smul.addr %s463, 4
          %s465 = smul.addr %s464, 8
          %s466 = scalar_lea.vmem %s8, %s465
        $region60: #{transformer_forward.1} parent=27 // pred_fallthru
          _
        // Predicated region
        $region61: #{transformer_forward.1} parent=27 // pred_check
          %p467 = pneg %p269
        $region62: #{transformer_forward.1} parent=27 // pred_check_branch
          %469 = sbr.rel (%p467) target = $region64
        $region63: #{transformer_forward.1} parent=27 // pred_region
          %p470 = scmp.lt.s32.totalorder %s20, 1
          %s471 = scalar_select %p470, %s20, 1
          %s472 = smul.addr %s471, 2
          %s473 = smul.addr %s472, 8
          %s474 = scalar_lea.vmem %s9, %s473
        $region64: #{transformer_forward.1} parent=27 // pred_fallthru
          _
        // Predicated region
        $region65: #{transformer_forward.1} parent=27 // pred_check
          %p475 = pneg %p295
        $region66: #{transformer_forward.1} parent=27 // pred_check_branch
          %477 = sbr.rel (%p475) target = $region68
        $region67: #{transformer_forward.1} parent=27 // pred_region
          %p478 = scmp.lt.s32.totalorder %s20, 1
          %s479 = scalar_select %p478, %s20, 1
          %s480 = smul.addr %s479, 2
          %s481 = smul.addr %s480, 8
          %s482 = scalar_lea.vmem %s10, %s481
        $region68: #{transformer_forward.1} parent=27 // pred_fallthru
          _
      $region28: #{transformer_forward.1} parent=5 // pred_fallthru
        _
      %p483 = scmp.le.s32.totalorder 1, %s20
      %p484 = scmp.lt.s32.totalorder %s20, 3
      %p485 = pnand %p483, %p484
      %p486 = pneg %p485
      // Predicated region
      $region69: #{transformer_forward.1} parent=5 // pred_check
        _
      $region70: #{transformer_forward.1} parent=5 // pred_check_branch
        %488 = sbr.rel (%p485) target = $region72
      $region71: #{transformer_forward.1} parent=5 // pred_region
        %s489 = ssub.s32 %s20, 1
        // Predicated region
        $region73: #{transformer_forward.1} parent=71 // pred_check
          %p490 = pneg %p322
        $region74: #{transformer_forward.1} parent=71 // pred_check_branch
          %492 = sbr.rel (%p490) target = $region76
        $region75: #{transformer_forward.1} parent=71 // pred_region
          %494 = dma.done [#allocation3], 6144
        $region76: #{transformer_forward.1} parent=71 // pred_fallthru
          _
        %p495 = pneg %p41
        %p496 = pneg %p38
        %p497 = scmp.lt.s32.totalorder %s25, 1
        %s498 = scalar_select %p497, %s25, 1
        %s499 = smul.addr %s498, 2
        %s500 = smul.addr %s499, 8
        %s501 = scalar_lea.vmem %s1, %s500
        %p502 = pneg %p67
        %p503 = pneg %p64
        %p504 = scmp.lt.s32.totalorder %s25, 1
        %s505 = scalar_select %p504, %s25, 1
        %s506 = smul.addr %s505, 2
        %s507 = smul.addr %s506, 8
        %s508 = scalar_lea.vmem %s2, %s507
        %p509 = pneg %p93
        %p510 = pneg %p90
        %p511 = scmp.lt.s32.totalorder %s25, 1
        %s512 = scalar_select %p511, %s25, 1
        %s513 = smul.addr %s512, 2
        %s514 = smul.addr %s513, 8
        %s515 = scalar_lea.vmem %s3, %s514
        %p516 = pneg %p119
        %p517 = pneg %p116
        %p518 = scmp.lt.s32.totalorder %s25, 1
        %s519 = scalar_select %p518, %s25, 1
        %s520 = smul.addr %s519, 2
        %s521 = smul.addr %s520, 8
        %s522 = scalar_lea.vmem %s4, %s521
        %p523 = pneg %p145
        %p524 = pneg %p142
        %p525 = scmp.lt.s32.totalorder %s25, 1
        %s526 = scalar_select %p525, %s25, 1
        %s527 = smul.addr %s526, 2
        %s528 = smul.addr %s527, 8
        %s529 = scalar_lea.vmem %s5, %s528
        %p530 = pneg %p171
        %p531 = pneg %p168
        %p532 = scmp.lt.s32.totalorder %s25, 1
        %s533 = scalar_select %p532, %s25, 1
        %s534 = smul.addr %s533, 2
        %s535 = smul.addr %s534, 8
        %s536 = scalar_lea.vmem %s6, %s535
        %p537 = pneg %p197
        %p538 = pneg %p194
        %p539 = scmp.lt.s32.totalorder %s25, 1
        %s540 = scalar_select %p539, %s25, 1
        %s541 = smul.addr %s540, 4
        %s542 = smul.addr %s541, 8
        %s543 = scalar_lea.vmem %s7, %s542
        %p544 = pneg %p223
        %p545 = pneg %p220
        %p546 = scmp.lt.s32.totalorder %s25, 1
        %s547 = scalar_select %p546, %s25, 1
        %s548 = smul.addr %s547, 4
        %s549 = smul.addr %s548, 8
        %s550 = scalar_lea.vmem %s8, %s549
        %p551 = pneg %p249
        %p552 = pneg %p246
        %p553 = scmp.lt.s32.totalorder %s25, 1
        %s554 = scalar_select %p553, %s25, 1
        %s555 = smul.addr %s554, 2
        %s556 = smul.addr %s555, 8
        %s557 = scalar_lea.vmem %s9, %s556
        %p558 = pneg %p275
        %p559 = pneg %p272
        %p560 = scmp.lt.s32.totalorder %s25, 1
        %s561 = scalar_select %p560, %s25, 1
        %s562 = smul.addr %s561, 2
        %s563 = smul.addr %s562, 8
        %s564 = scalar_lea.vmem %s10, %s563
        %p565 = pneg %p301
        %p566 = pneg %p298
        %p567 = pneg %p322
        %p568 = pneg %p319
        %p569 = pneg %p343
        %p570 = pneg %p340
        %p571 = pneg %p364
        %p572 = pneg %p361
        %p573 = scmp.lt.s32.totalorder %s25, 1
        %s574 = scalar_select %p573, %s25, 1
        %s575 = smul.addr %s574, 2
        %s576 = smul.addr %s575, 8
        %s577 = scalar_lea.vmem %s1, %s576
        %p578 = scmp.lt.s32.totalorder %s25, 1
        %s579 = scalar_select %p578, %s25, 1
        %s580 = smul.addr %s579, 2
        %s581 = smul.addr %s580, 8
        %s582 = scalar_lea.vmem %s2, %s581
        %p583 = scmp.lt.s32.totalorder %s25, 1
        %s584 = scalar_select %p583, %s25, 1
        %s585 = smul.addr %s584, 2
        %s586 = smul.addr %s585, 8
        %s587 = scalar_lea.vmem %s3, %s586
        %p588 = scmp.lt.s32.totalorder %s25, 1
        %s589 = scalar_select %p588, %s25, 1
        %s590 = smul.addr %s589, 2
        %s591 = smul.addr %s590, 8
        %s592 = scalar_lea.vmem %s4, %s591
        %p593 = scmp.lt.s32.totalorder %s25, 1
        %s594 = scalar_select %p593, %s25, 1
        %s595 = smul.addr %s594, 2
        %s596 = smul.addr %s595, 8
        %s597 = scalar_lea.vmem %s5, %s596
        %p598 = scmp.lt.s32.totalorder %s25, 1
        %s599 = scalar_select %p598, %s25, 1
        %s600 = smul.addr %s599, 2
        %s601 = smul.addr %s600, 8
        %s602 = scalar_lea.vmem %s6, %s601
        %p603 = scmp.lt.s32.totalorder %s25, 1
        %s604 = scalar_select %p603, %s25, 1
        %s605 = smul.addr %s604, 4
        %s606 = smul.addr %s605, 8
        %s607 = scalar_lea.vmem %s7, %s606
        %p608 = scmp.lt.s32.totalorder %s25, 1
        %s609 = scalar_select %p608, %s25, 1
        %s610 = smul.addr %s609, 4
        %s611 = smul.addr %s610, 8
        %s612 = scalar_lea.vmem %s8, %s611
        %p613 = scmp.lt.s32.totalorder %s25, 1
        %s614 = scalar_select %p613, %s25, 1
        %s615 = smul.addr %s614, 2
        %s616 = smul.addr %s615, 8
        %s617 = scalar_lea.vmem %s9, %s616
        %p618 = scmp.lt.s32.totalorder %s25, 1
        %s619 = scalar_select %p618, %s25, 1
        %s620 = smul.addr %s619, 2
        %s621 = smul.addr %s620, 8
        %s622 = scalar_lea.vmem %s10, %s621
        %p623 = scmp.eq.s32.totalorder %s25, 0
        // Predicated region
        $region77: #{transformer_forward.1} parent=71 // pred_check
          %p624 = pneg %p623
        $region78: #{transformer_forward.1} parent=71 // pred_check_branch
          %626 = sbr.rel (%p624) target = $region80
        $region79: #{transformer_forward.1} parent=71 // pred_region
          %v627 = vld [vmem:[%s0] sm:$0xff]
          %v628 = vld [vmem:[%s0 + $0x8] sm:$0xff]
          %629 = vst [vmem:[%s13] sm:$0xff] %v627
          %630 = vst [vmem:[%s13 + $0x8] sm:$0xff] %v628
        $region80: #{transformer_forward.1} parent=71 // pred_fallthru
          _
        %v631 = vld [vmem:[%s13] sm:$0xff]
        %v632 = vld [vmem:[%s13 + $0x8] sm:$0xff]
        %v633 = vld [vmem:[%s577] sm:$0xff]
        %v634 = vld [vmem:[%s577 + $0x8] sm:$0xff]
        %v635 = vld [vmem:[%s582] sm:$0xff]
        %v636 = vld [vmem:[%s582 + $0x8] sm:$0xff]
        %v637 = vadd.f32 %v631, %v632
        %v638 = vrot.slane %v637, 4
        %v639 = vadd.f32 %v637, %v638
        %v640 = vrot.slane %v639, 2
        %v641 = vadd.f32 %v639, %v640
        %v642 = vrot.slane %v641, 1
        %v643 = vadd.f32 %v641, %v642
        %v644 = vrcp.pop 16.0
        %v645 = vmul.f32 16.0, %v644
        %v646 = vsub.f32 1.0, %v645
        %v647 = vmul.f32 %v644, %v646
        %v648 = vadd.f32 %v644, %v647
        %vm649 = vweird.f32 %v644
        %v650 = vsel %vm649, %v644, %v648
        %v651 = vmul.f32 %v643, %v650
        %v652 = vsub.f32 %v631, %v651
        %v653 = vsub.f32 %v632, %v651
        %v654 = vmul.f32 %v652, %v652
        %v655 = vmul.f32 %v653, %v653
        %v656 = vadd.f32 %v654, %v655
        %v657 = vrot.slane %v656, 4
        %v658 = vadd.f32 %v656, %v657
        %v659 = vrot.slane %v658, 2
        %v660 = vadd.f32 %v658, %v659
        %v661 = vrot.slane %v660, 1
        %v662 = vadd.f32 %v660, %v661
        %v663 = vmul.f32 %v662, %v650
        %v664 = vadd.f32 %v663, 1e-05
        %v665 = vrsqrt.pop %v664
        %v666 = vmul.f32 %v665, %v664
        %v667 = vmul.f32 %v666, %v665
        %v668 = vmul.f32 0.5, %v667
        %v669 = vsub.f32 1.5, %v668
        %v670 = vmul.f32 %v665, %v669
        %vm671 = vweird.f32 %v664
        %vm672 = vweird.f32 %v665
        %vm673 = vmor %vm671, %vm672
        %v674 = vsel %vm673, %v665, %v670
        %v675 = vmul.f32 %v652, %v674
        %v676 = vmul.f32 %v653, %v674
        %678 = vset.pattern.permute.xlu0 0
        %679 = vperm.xlu0 %678, %v633
        %v680 = vpop.permute.xlu0 %679
        %683 = vset.pattern.permute.xlu0 0
        %684 = vperm.xlu0 %683, %v634
        %v685 = vpop.permute.xlu0 %684
        %v687 = vmul.f32 %v675, %v680
        %v688 = vmul.f32 %v676, %v685
        %690 = vset.pattern.permute.xlu0 0
        %691 = vperm.xlu0 %690, %v635
        %v692 = vpop.permute.xlu0 %691
        %695 = vset.pattern.permute.xlu0 0
        %696 = vperm.xlu0 %695, %v636
        %v697 = vpop.permute.xlu0 %696
        %v699 = vadd.f32 %v687, %v692
        %v700 = vadd.f32 %v688, %v697
        %v701 = vld [vmem:[#allocation2] sm:$0xff]
        %v702 = vld [vmem:[#allocation2 + $0x8] sm:$0xff]
        %v703 = vld [vmem:[#allocation2 + $0x10] sm:$0xff]
        %v704 = vld [vmem:[#allocation2 + $0x18] sm:$0xff]
        %v705 = vld [vmem:[#allocation2 + $0x20] sm:$0xff]
        %v706 = vld [vmem:[#allocation2 + $0x28] sm:$0xff]
        %v707 = vld [vmem:[#allocation2 + $0x30] sm:$0xff]
        %v708 = vld [vmem:[#allocation2 + $0x38] sm:$0xff]
        %v709 = vld [vmem:[#allocation2 + $0x40] sm:$0xff]
        %v710 = vld [vmem:[#allocation2 + $0x48] sm:$0xff]
        %v711 = vld [vmem:[#allocation2 + $0x50] sm:$0xff]
        %v712 = vld [vmem:[#allocation2 + $0x58] sm:$0xff]
        %v713 = vld [vmem:[#allocation2 + $0x60] sm:$0xff]
        %v714 = vld [vmem:[#allocation2 + $0x68] sm:$0xff]
        %v715 = vld [vmem:[#allocation2 + $0x70] sm:$0xff]
        %v716 = vld [vmem:[#allocation2 + $0x78] sm:$0xff]
        %v717 = vld [vmem:[#allocation2 + $0x80] sm:$0xff]
        %v718 = vld [vmem:[#allocation2 + $0x88] sm:$0xff]
        %v719 = vld [vmem:[#allocation2 + $0x90] sm:$0xff]
        %v720 = vld [vmem:[#allocation2 + $0x98] sm:$0xff]
        %v721 = vld [vmem:[#allocation2 + $0xa0] sm:$0xff]
        %v722 = vld [vmem:[#allocation2 + $0xa8] sm:$0xff]
        %v723 = vld [vmem:[#allocation2 + $0xb0] sm:$0xff]
        %v724 = vld [vmem:[#allocation2 + $0xb8] sm:$0xff]
        %v725 = vld [vmem:[#allocation2 + $0xc0] sm:$0xff]
        %v726 = vld [vmem:[#allocation2 + $0xc8] sm:$0xff]
        %v727 = vld [vmem:[#allocation2 + $0xd0] sm:$0xff]
        %v728 = vld [vmem:[#allocation2 + $0xd8] sm:$0xff]
        %v729 = vld [vmem:[#allocation2 + $0xe0] sm:$0xff]
        %v730 = vld [vmem:[#allocation2 + $0xe8] sm:$0xff]
        %v731 = vld [vmem:[#allocation2 + $0xf0] sm:$0xff]
        %v732 = vld [vmem:[#allocation2 + $0xf8] sm:$0xff]
        %v733 = vld [vmem:[#allocation2 + $0x100] sm:$0xff]
        %v734 = vld [vmem:[#allocation2 + $0x108] sm:$0xff]
        %v735 = vld [vmem:[#allocation2 + $0x110] sm:$0xff]
        %v736 = vld [vmem:[#allocation2 + $0x118] sm:$0xff]
        %v737 = vld [vmem:[#allocation2 + $0x120] sm:$0xff]
        %v738 = vld [vmem:[#allocation2 + $0x128] sm:$0xff]
        %v739 = vld [vmem:[#allocation2 + $0x130] sm:$0xff]
        %v740 = vld [vmem:[#allocation2 + $0x138] sm:$0xff]
        %v741 = vld [vmem:[#allocation2 + $0x140] sm:$0xff]
        %v742 = vld [vmem:[#allocation2 + $0x148] sm:$0xff]
        %v743 = vld [vmem:[#allocation2 + $0x150] sm:$0xff]
        %v744 = vld [vmem:[#allocation2 + $0x158] sm:$0xff]
        %v745 = vld [vmem:[#allocation2 + $0x160] sm:$0xff]
        %v746 = vld [vmem:[#allocation2 + $0x168] sm:$0xff]
        %v747 = vld [vmem:[#allocation2 + $0x170] sm:$0xff]
        %v748 = vld [vmem:[#allocation2 + $0x178] sm:$0xff]
        %749 = vmatpush.msra.mxu0 %v746
        %750 = vmatpush.msra.mxu0 %v743
        %751 = vmatpush.msra.mxu0 %v740
        %752 = vmatpush.msra.mxu0 %v737
        %753 = vmatpush.msra.mxu0 %v734
        %754 = vmatpush.msra.mxu0 %v731
        %755 = vmatpush.msra.mxu0 %v728
        %756 = vmatpush.msra.mxu0 %v725
        %757 = vmatpush.msra.mxu0 %v722
        %758 = vmatpush.msra.mxu0 %v719
        %759 = vmatpush.msra.mxu0 %v716
        %760 = vmatpush.msra.mxu0 %v713
        %761 = vmatpush.msra.mxu0 %v710
        %762 = vmatpush.msra.mxu0 %v707
        %763 = vmatpush.msra.mxu0 %v704
        %764 = vmatpush.msra.mxu0 %v701
        %765 = vmatmul.f32.gmra.mxu0 %v699
        %v766 = vpop.f32.mrf.mxu0
        %v767 = vadd.f32 0.0, %v766
        %768 = vmatmul.f32.gmra.mxu0 %v700
        %v769 = vpop.f32.mrf.mxu0
        %v770 = vadd.f32 0.0, %v769
        %771 = vdwg.mxu0
        %772 = vmatpush.msra.mxu0 %v747
        %773 = vmatpush.msra.mxu0 %v744
        %774 = vmatpush.msra.mxu0 %v741
        %775 = vmatpush.msra.mxu0 %v738
        %776 = vmatpush.msra.mxu0 %v735
        %777 = vmatpush.msra.mxu0 %v732
        %778 = vmatpush.msra.mxu0 %v729
        %779 = vmatpush.msra.mxu0 %v726
        %780 = vmatpush.msra.mxu0 %v723
        %781 = vmatpush.msra.mxu0 %v720
        %782 = vmatpush.msra.mxu0 %v717
        %783 = vmatpush.msra.mxu0 %v714
        %784 = vmatpush.msra.mxu0 %v711
        %785 = vmatpush.msra.mxu0 %v708
        %786 = vmatpush.msra.mxu0 %v705
        %787 = vmatpush.msra.mxu0 %v702
        %788 = vmatmul.f32.gmra.mxu0 %v699
        %v789 = vpop.f32.mrf.mxu0
        %v790 = vadd.f32 0.0, %v789
        %791 = vmatmul.f32.gmra.mxu0 %v700
        %v792 = vpop.f32.mrf.mxu0
        %v793 = vadd.f32 0.0, %v792
        %794 = vdwg.mxu0
        %795 = vmatpush.msra.mxu0 %v748
        %796 = vmatpush.msra.mxu0 %v745
        %797 = vmatpush.msra.mxu0 %v742
        %798 = vmatpush.msra.mxu0 %v739
        %799 = vmatpush.msra.mxu0 %v736
        %800 = vmatpush.msra.mxu0 %v733
        %801 = vmatpush.msra.mxu0 %v730
        %802 = vmatpush.msra.mxu0 %v727
        %803 = vmatpush.msra.mxu0 %v724
        %804 = vmatpush.msra.mxu0 %v721
        %805 = vmatpush.msra.mxu0 %v718
        %806 = vmatpush.msra.mxu0 %v715
        %807 = vmatpush.msra.mxu0 %v712
        %808 = vmatpush.msra.mxu0 %v709
        %809 = vmatpush.msra.mxu0 %v706
        %810 = vmatpush.msra.mxu0 %v703
        %811 = vmatmul.f32.gmra.mxu0 %v699
        %v812 = vpop.f32.mrf.mxu0
        %v813 = vadd.f32 0.0, %v812
        %814 = vmatmul.f32.gmra.mxu0 %v700
        %v815 = vpop.f32.mrf.mxu0
        %v816 = vadd.f32 0.0, %v815
        %817 = vdwg.mxu0
        %v818 = vmul.f32 %v699, -3.0
        %v819 = vmul.f32 %v700, -3.0
        %v820 = vld [vmem:[%s12] sm:$0xff]
        %v821 = vld [vmem:[%s12 + $0x8] sm:$0xff]
        %vm822 = vcmask 130048
        %v824 = vsel %vm822, %v820, 0
        %v827 = vsel %vm822, %v821, 0
        %829 = vmatpush.msra.mxu0 0.0
        %830 = vmatpush.msra.mxu0 0.0
        %831 = vmatpush.msra.mxu0 0.0
        %832 = vmatpush.msra.mxu0 0.0
        %833 = vmatpush.msra.mxu0 0.0
        %834 = vmatpush.msra.mxu0 0.0
        %835 = vmatpush.msra.mxu0 0.0
        %836 = vmatpush.msra.mxu0 0.0
        %837 = vmatpush.msra.mxu0 0.0
        %838 = vmatpush.msra.mxu0 0.0
        %839 = vmatpush.msra.mxu0 0.0
        %840 = vmatpush.msra.mxu0 0.0
        %841 = vmatpush.msra.mxu0 0.0
        %842 = vmatpush.msra.mxu0 0.0
        %843 = vmatpush.msra.mxu0 %v770
        %844 = vmatpush.msra.mxu0 %v767
        %845 = vmatmul.f32.gmra.mxu0 %v824
        %v846 = vpop.f32.mrf.mxu0
        %v847 = vadd.f32 0.0, %v846
        %848 = vmatmul.f32.gmra.mxu0 %v827
        %v849 = vpop.f32.mrf.mxu0
        %v850 = vadd.f32 0.0, %v849
        %851 = vdwg.mxu0
        %v852 = vadd.f32 %v818, %v847
        %v853 = vadd.f32 %v819, %v850
        %s854 = scalar_lea.vmem %s12, 16
        %v855 = vld [vmem:[%s854] sm:$0xff]
        %v856 = vld [vmem:[%s854 + $0x8] sm:$0xff]
        %v858 = vsel %vm822, %v855, 0
        %v861 = vsel %vm822, %v856, 0
        %863 = vmatpush.msra.mxu0 0.0
        %864 = vmatpush.msra.mxu0 0.0
        %865 = vmatpush.msra.mxu0 0.0
        %866 = vmatpush.msra.mxu0 0.0
        %867 = vmatpush.msra.mxu0 0.0
        %868 = vmatpush.msra.mxu0 0.0
        %869 = vmatpush.msra.mxu0 0.0
        %870 = vmatpush.msra.mxu0 0.0
        %871 = vmatpush.msra.mxu0 0.0
        %872 = vmatpush.msra.mxu0 0.0
        %873 = vmatpush.msra.mxu0 0.0
        %874 = vmatpush.msra.mxu0 0.0
        %875 = vmatpush.msra.mxu0 0.0
        %876 = vmatpush.msra.mxu0 0.0
        %877 = vmatpush.msra.mxu0 %v793
        %878 = vmatpush.msra.mxu0 %v790
        %879 = vmatmul.f32.gmra.mxu0 %v858
        %v880 = vpop.f32.mrf.mxu0
        %v881 = vadd.f32 0.0, %v880
        %882 = vmatmul.f32.gmra.mxu0 %v861
        %v883 = vpop.f32.mrf.mxu0
        %v884 = vadd.f32 0.0, %v883
        %885 = vdwg.mxu0
        %v886 = vadd.f32 %v852, %v881
        %v887 = vadd.f32 %v853, %v884
        %s888 = scalar_lea.vmem %s12, 32
        %v889 = vld [vmem:[%s888] sm:$0xff]
        %v890 = vld [vmem:[%s888 + $0x8] sm:$0xff]
        %v892 = vsel %vm822, %v889, 0
        %v895 = vsel %vm822, %v890, 0
        %897 = vmatpush.msra.mxu0 0.0
        %898 = vmatpush.msra.mxu0 0.0
        %899 = vmatpush.msra.mxu0 0.0
        %900 = vmatpush.msra.mxu0 0.0
        %901 = vmatpush.msra.mxu0 0.0
        %902 = vmatpush.msra.mxu0 0.0
        %903 = vmatpush.msra.mxu0 0.0
        %904 = vmatpush.msra.mxu0 0.0
        %905 = vmatpush.msra.mxu0 0.0
        %906 = vmatpush.msra.mxu0 0.0
        %907 = vmatpush.msra.mxu0 0.0
        %908 = vmatpush.msra.mxu0 0.0
        %909 = vmatpush.msra.mxu0 0.0
        %910 = vmatpush.msra.mxu0 0.0
        %911 = vmatpush.msra.mxu0 %v816
        %912 = vmatpush.msra.mxu0 %v813
        %913 = vmatmul.f32.gmra.mxu0 %v892
        %v914 = vpop.f32.mrf.mxu0
        %v915 = vadd.f32 0.0, %v914
        %916 = vmatmul.f32.gmra.mxu0 %v895
        %v917 = vpop.f32.mrf.mxu0
        %v918 = vadd.f32 0.0, %v917
        %919 = vdwg.mxu0
        %v920 = vadd.f32 %v886, %v915
        %v921 = vadd.f32 %v887, %v918
        %v922 = vld [vmem:[%s587] sm:$0xff]
        %v923 = vld [vmem:[%s587 + $0x8] sm:$0xff]
        %v924 = vld [vmem:[%s592] sm:$0xff]
        %v925 = vld [vmem:[%s592 + $0x8] sm:$0xff]
        %927 = vset.pattern.permute.xlu0 0
        %928 = vperm.xlu0 %927, %v924
        %v929 = vpop.permute.xlu0 %928
        %932 = vset.pattern.permute.xlu0 0
        %933 = vperm.xlu0 %932, %v925
        %v934 = vpop.permute.xlu0 %933
        %v937 = vsel %vm822, %v922, 0
        %v940 = vsel %vm822, %v923, 0
        %942 = vmatpush.msra.mxu0 0.0
        %943 = vmatpush.msra.mxu0 0.0
        %944 = vmatpush.msra.mxu0 0.0
        %945 = vmatpush.msra.mxu0 0.0
        %946 = vmatpush.msra.mxu0 0.0
        %947 = vmatpush.msra.mxu0 0.0
        %948 = vmatpush.msra.mxu0 0.0
        %949 = vmatpush.msra.mxu0 0.0
        %950 = vmatpush.msra.mxu0 0.0
        %951 = vmatpush.msra.mxu0 0.0
        %952 = vmatpush.msra.mxu0 0.0
        %953 = vmatpush.msra.mxu0 0.0
        %954 = vmatpush.msra.mxu0 0.0
        %955 = vmatpush.msra.mxu0 0.0
        %956 = vmatpush.msra.mxu0 %v921
        %957 = vmatpush.msra.mxu0 %v920
        %958 = vmatmul.f32.gmra.mxu0 %v937
        %v959 = vpop.f32.mrf.mxu0
        %v960 = vadd.f32 %v929, %v959
        %961 = vmatmul.f32.gmra.mxu0 %v940
        %v962 = vpop.f32.mrf.mxu0
        %v963 = vadd.f32 %v934, %v962
        %964 = vdwg.mxu0
        %v965 = vadd.f32 %v960, %v631
        %v966 = vadd.f32 %v963, %v632
        %v967 = vld [vmem:[%s597] sm:$0xff]
        %v968 = vld [vmem:[%s597 + $0x8] sm:$0xff]
        %v969 = vld [vmem:[%s602] sm:$0xff]
        %v970 = vld [vmem:[%s602 + $0x8] sm:$0xff]
        %v971 = vadd.f32 %v965, %v966
        %v972 = vrot.slane %v971, 4
        %v973 = vadd.f32 %v971, %v972
        %v974 = vrot.slane %v973, 2
        %v975 = vadd.f32 %v973, %v974
        %v976 = vrot.slane %v975, 1
        %v977 = vadd.f32 %v975, %v976
        %v978 = vmul.f32 %v977, %v650
        %v979 = vsub.f32 %v965, %v978
        %v980 = vsub.f32 %v966, %v978
        %v981 = vmul.f32 %v979, %v979
        %v982 = vmul.f32 %v980, %v980
        %v983 = vadd.f32 %v981, %v982
        %v984 = vrot.slane %v983, 4
        %v985 = vadd.f32 %v983, %v984
        %v986 = vrot.slane %v985, 2
        %v987 = vadd.f32 %v985, %v986
        %v988 = vrot.slane %v987, 1
        %v989 = vadd.f32 %v987, %v988
        %v990 = vmul.f32 %v989, %v650
        %v991 = vadd.f32 %v990, 1e-05
        %v992 = vrsqrt.pop %v991
        %v993 = vmul.f32 %v992, %v991
        %v994 = vmul.f32 %v993, %v992
        %v995 = vmul.f32 0.5, %v994
        %v996 = vsub.f32 1.5, %v995
        %v997 = vmul.f32 %v992, %v996
        %vm998 = vweird.f32 %v991
        %vm999 = vweird.f32 %v992
        %vm1000 = vmor %vm998, %vm999
        %v1001 = vsel %vm1000, %v992, %v997
        %v1002 = vmul.f32 %v979, %v1001
        %v1003 = vmul.f32 %v980, %v1001
        %1005 = vset.pattern.permute.xlu0 0
        %1006 = vperm.xlu0 %1005, %v967
        %v1007 = vpop.permute.xlu0 %1006
        %1010 = vset.pattern.permute.xlu0 0
        %1011 = vperm.xlu0 %1010, %v968
        %v1012 = vpop.permute.xlu0 %1011
        %v1014 = vmul.f32 %v1002, %v1007
        %v1015 = vmul.f32 %v1003, %v1012
        %1017 = vset.pattern.permute.xlu0 0
        %1018 = vperm.xlu0 %1017, %v969
        %v1019 = vpop.permute.xlu0 %1018
        %1022 = vset.pattern.permute.xlu0 0
        %1023 = vperm.xlu0 %1022, %v970
        %v1024 = vpop.permute.xlu0 %1023
        %v1026 = vadd.f32 %v1014, %v1019
        %v1027 = vadd.f32 %v1015, %v1024
        %v1028 = vld [vmem:[%s607] sm:$0xff]
        %v1029 = vld [vmem:[%s607 + $0x8] sm:$0xff]
        %v1030 = vld [vmem:[%s607 + $0x10] sm:$0xff]
        %v1031 = vld [vmem:[%s607 + $0x18] sm:$0xff]
        %v1032 = vld [vmem:[%s612] sm:$0xff]
        %v1033 = vld [vmem:[%s612 + $0x8] sm:$0xff]
        %v1034 = vld [vmem:[%s612 + $0x10] sm:$0xff]
        %v1035 = vld [vmem:[%s612 + $0x18] sm:$0xff]
        %1037 = vset.pattern.permute.xlu0 0
        %1038 = vperm.xlu0 %1037, %v1032
        %v1039 = vpop.permute.xlu0 %1038
        %1042 = vset.pattern.permute.xlu0 0
        %1043 = vperm.xlu0 %1042, %v1033
        %v1044 = vpop.permute.xlu0 %1043
        %1047 = vset.pattern.permute.xlu0 0
        %1048 = vperm.xlu0 %1047, %v1034
        %v1049 = vpop.permute.xlu0 %1048
        %1052 = vset.pattern.permute.xlu0 0
        %1053 = vperm.xlu0 %1052, %v1035
        %v1054 = vpop.permute.xlu0 %1053
        %v1057 = vsel %vm822, %v1028, 0
        %v1060 = vsel %vm822, %v1029, 0
        %v1063 = vsel %vm822, %v1030, 0
        %v1066 = vsel %vm822, %v1031, 0
        %1068 = vmatpush.msra.mxu0 0.0
        %1069 = vmatpush.msra.mxu0 0.0
        %1070 = vmatpush.msra.mxu0 0.0
        %1071 = vmatpush.msra.mxu0 0.0
        %1072 = vmatpush.msra.mxu0 0.0
        %1073 = vmatpush.msra.mxu0 0.0
        %1074 = vmatpush.msra.mxu0 0.0
        %1075 = vmatpush.msra.mxu0 0.0
        %1076 = vmatpush.msra.mxu0 0.0
        %1077 = vmatpush.msra.mxu0 0.0
        %1078 = vmatpush.msra.mxu0 0.0
        %1079 = vmatpush.msra.mxu0 0.0
        %1080 = vmatpush.msra.mxu0 0.0
        %1081 = vmatpush.msra.mxu0 0.0
        %1082 = vmatpush.msra.mxu0 %v1027
        %1083 = vmatpush.msra.mxu0 %v1026
        %1084 = vmatmul.f32.gmra.mxu0 %v1057
        %v1085 = vpop.f32.mrf.mxu0
        %v1086 = vadd.f32 %v1039, %v1085
        %1087 = vmatmul.f32.gmra.mxu0 %v1060
        %v1088 = vpop.f32.mrf.mxu0
        %v1089 = vadd.f32 %v1044, %v1088
        %1090 = vmatmul.f32.gmra.mxu0 %v1063
        %v1091 = vpop.f32.mrf.mxu0
        %v1092 = vadd.f32 %v1049, %v1091
        %1093 = vmatmul.f32.gmra.mxu0 %v1066
        %v1094 = vpop.f32.mrf.mxu0
        %v1095 = vadd.f32 %v1054, %v1094
        %1096 = vdwg.mxu0
        %v1097 = vmul.f32 %v1086, 0.5
        %v1098 = vmul.f32 %v1089, 0.5
        %v1099 = vmul.f32 %v1092, 0.5
        %v1100 = vmul.f32 %v1095, 0.5
        %v1101 = vmul.f32 %v1086, 0.70710677
        %v1102 = vmul.f32 %v1089, 0.70710677
        %v1103 = vmul.f32 %v1092, 0.70710677
        %v1104 = vmul.f32 %v1095, 0.70710677
        %v1105 = vmul.f32 %v1101, %v1101
        %v1106 = vmin.f32 16.0, %v1105
        %v1107 = vmul.f32 %v1106, 2.1237322e-06
        %v1108 = vadd.f32 %v1107, 0.00028619796
        %v1109 = vmul.f32 %v1106, %v1108
        %v1110 = vadd.f32 %v1109, 0.0036580483
        %v1111 = vmul.f32 %v1106, %v1110
        %v1112 = vadd.f32 %v1111, 0.05243302
        %v1113 = vmul.f32 %v1106, %v1112
        %v1114 = vadd.f32 %v1113, 0.18741608
        %v1115 = vmul.f32 %v1106, %v1114
        %v1116 = vadd.f32 %v1115, 1.1283791
        %v1117 = vmul.f32 %v1101, %v1116
        %v1118 = vmul.f32 %v1106, 3.8918573e-05
        %v1119 = vadd.f32 %v1118, 0.001143296
        %v1120 = vmul.f32 %v1106, %v1119
        %v1121 = vadd.f32 %v1120, 0.014752088
        %v1122 = vmul.f32 %v1106, %v1121
        %v1123 = vadd.f32 %v1122, 0.112945676
        %v1124 = vmul.f32 %v1106, %v1123
        %v1125 = vadd.f32 %v1124, 0.4994258
        %v1126 = vmul.f32 %v1106, %v1125
        %v1127 = vadd.f32 %v1126, 1.0
        %v1128 = vrcp.pop %v1127
        %v1129 = vmul.f32 %v1127, %v1128
        %v1130 = vsub.f32 1.0, %v1129
        %v1131 = vmul.f32 %v1128, %v1130
        %v1132 = vadd.f32 %v1128, %v1131
        %vm1133 = vweird.f32 %v1127
        %vm1134 = vweird.f32 %v1128
        %vm1135 = vmor %vm1133, %vm1134
        %v1136 = vsel %vm1135, %v1128, %v1132
        %v1137 = vand.u32 2147483647, %v1127
        %vm1138 = vcmp.eq.f32.partialorder %v1137, 8.507059e+37
        %v1139 = vand.u32 %v1127, 2147483648
        %v1140 = vor.u32 1.1754944e-38, %v1139
        %v1141 = vsel %vm1138, %v1140, %v1136
        %v1142 = vmul.f32 %v1117, %v1141
        %v1143 = vmin.f32 %v1142, 1.0
        %v1144 = vmax.f32 %v1143, -1.0
        %v1145 = vmul.f32 %v1102, %v1102
        %v1146 = vmin.f32 16.0, %v1145
        %v1147 = vmul.f32 %v1146, 2.1237322e-06
        %v1148 = vadd.f32 %v1147, 0.00028619796
        %v1149 = vmul.f32 %v1146, %v1148
        %v1150 = vadd.f32 %v1149, 0.0036580483
        %v1151 = vmul.f32 %v1146, %v1150
        %v1152 = vadd.f32 %v1151, 0.05243302
        %v1153 = vmul.f32 %v1146, %v1152
        %v1154 = vadd.f32 %v1153, 0.18741608
        %v1155 = vmul.f32 %v1146, %v1154
        %v1156 = vadd.f32 %v1155, 1.1283791
        %v1157 = vmul.f32 %v1102, %v1156
        %v1158 = vmul.f32 %v1146, 3.8918573e-05
        %v1159 = vadd.f32 %v1158, 0.001143296
        %v1160 = vmul.f32 %v1146, %v1159
        %v1161 = vadd.f32 %v1160, 0.014752088
        %v1162 = vmul.f32 %v1146, %v1161
        %v1163 = vadd.f32 %v1162, 0.112945676
        %v1164 = vmul.f32 %v1146, %v1163
        %v1165 = vadd.f32 %v1164, 0.4994258
        %v1166 = vmul.f32 %v1146, %v1165
        %v1167 = vadd.f32 %v1166, 1.0
        %v1168 = vrcp.pop %v1167
        %v1169 = vmul.f32 %v1167, %v1168
        %v1170 = vsub.f32 1.0, %v1169
        %v1171 = vmul.f32 %v1168, %v1170
        %v1172 = vadd.f32 %v1168, %v1171
        %vm1173 = vweird.f32 %v1167
        %vm1174 = vweird.f32 %v1168
        %vm1175 = vmor %vm1173, %vm1174
        %v1176 = vsel %vm1175, %v1168, %v1172
        %v1177 = vand.u32 2147483647, %v1167
        %vm1178 = vcmp.eq.f32.partialorder %v1177, 8.507059e+37
        %v1179 = vand.u32 %v1167, 2147483648
        %v1180 = vor.u32 1.1754944e-38, %v1179
        %v1181 = vsel %vm1178, %v1180, %v1176
        %v1182 = vmul.f32 %v1157, %v1181
        %v1183 = vmin.f32 %v1182, 1.0
        %v1184 = vmax.f32 %v1183, -1.0
        %v1185 = vmul.f32 %v1103, %v1103
        %v1186 = vmin.f32 16.0, %v1185
        %v1187 = vmul.f32 %v1186, 2.1237322e-06
        %v1188 = vadd.f32 %v1187, 0.00028619796
        %v1189 = vmul.f32 %v1186, %v1188
        %v1190 = vadd.f32 %v1189, 0.0036580483
        %v1191 = vmul.f32 %v1186, %v1190
        %v1192 = vadd.f32 %v1191, 0.05243302
        %v1193 = vmul.f32 %v1186, %v1192
        %v1194 = vadd.f32 %v1193, 0.18741608
        %v1195 = vmul.f32 %v1186, %v1194
        %v1196 = vadd.f32 %v1195, 1.1283791
        %v1197 = vmul.f32 %v1103, %v1196
        %v1198 = vmul.f32 %v1186, 3.8918573e-05
        %v1199 = vadd.f32 %v1198, 0.001143296
        %v1200 = vmul.f32 %v1186, %v1199
        %v1201 = vadd.f32 %v1200, 0.014752088
        %v1202 = vmul.f32 %v1186, %v1201
        %v1203 = vadd.f32 %v1202, 0.112945676
        %v1204 = vmul.f32 %v1186, %v1203
        %v1205 = vadd.f32 %v1204, 0.4994258
        %v1206 = vmul.f32 %v1186, %v1205
        %v1207 = vadd.f32 %v1206, 1.0
        %v1208 = vrcp.pop %v1207
        %v1209 = vmul.f32 %v1207, %v1208
        %v1210 = vsub.f32 1.0, %v1209
        %v1211 = vmul.f32 %v1208, %v1210
        %v1212 = vadd.f32 %v1208, %v1211
        %vm1213 = vweird.f32 %v1207
        %vm1214 = vweird.f32 %v1208
        %vm1215 = vmor %vm1213, %vm1214
        %v1216 = vsel %vm1215, %v1208, %v1212
        %v1217 = vand.u32 2147483647, %v1207
        %vm1218 = vcmp.eq.f32.partialorder %v1217, 8.507059e+37
        %v1219 = vand.u32 %v1207, 2147483648
        %v1220 = vor.u32 1.1754944e-38, %v1219
        %v1221 = vsel %vm1218, %v1220, %v1216
        %v1222 = vmul.f32 %v1197, %v1221
        %v1223 = vmin.f32 %v1222, 1.0
        %v1224 = vmax.f32 %v1223, -1.0
        %v1225 = vmul.f32 %v1104, %v1104
        %v1226 = vmin.f32 16.0, %v1225
        %v1227 = vmul.f32 %v1226, 2.1237322e-06
        %v1228 = vadd.f32 %v1227, 0.00028619796
        %v1229 = vmul.f32 %v1226, %v1228
        %v1230 = vadd.f32 %v1229, 0.0036580483
        %v1231 = vmul.f32 %v1226, %v1230
        %v1232 = vadd.f32 %v1231, 0.05243302
        %v1233 = vmul.f32 %v1226, %v1232
        %v1234 = vadd.f32 %v1233, 0.18741608
        %v1235 = vmul.f32 %v1226, %v1234
        %v1236 = vadd.f32 %v1235, 1.1283791
        %v1237 = vmul.f32 %v1104, %v1236
        %v1238 = vmul.f32 %v1226, 3.8918573e-05
        %v1239 = vadd.f32 %v1238, 0.001143296
        %v1240 = vmul.f32 %v1226, %v1239
        %v1241 = vadd.f32 %v1240, 0.014752088
        %v1242 = vmul.f32 %v1226, %v1241
        %v1243 = vadd.f32 %v1242, 0.112945676
        %v1244 = vmul.f32 %v1226, %v1243
        %v1245 = vadd.f32 %v1244, 0.4994258
        %v1246 = vmul.f32 %v1226, %v1245
        %v1247 = vadd.f32 %v1246, 1.0
        %v1248 = vrcp.pop %v1247
        %v1249 = vmul.f32 %v1247, %v1248
        %v1250 = vsub.f32 1.0, %v1249
        %v1251 = vmul.f32 %v1248, %v1250
        %v1252 = vadd.f32 %v1248, %v1251
        %vm1253 = vweird.f32 %v1247
        %vm1254 = vweird.f32 %v1248
        %vm1255 = vmor %vm1253, %vm1254
        %v1256 = vsel %vm1255, %v1248, %v1252
        %v1257 = vand.u32 2147483647, %v1247
        %vm1258 = vcmp.eq.f32.partialorder %v1257, 8.507059e+37
        %v1259 = vand.u32 %v1247, 2147483648
        %v1260 = vor.u32 1.1754944e-38, %v1259
        %v1261 = vsel %vm1258, %v1260, %v1256
        %v1262 = vmul.f32 %v1237, %v1261
        %v1263 = vmin.f32 %v1262, 1.0
        %v1264 = vmax.f32 %v1263, -1.0
        %v1265 = vadd.f32 %v1144, 1.0
        %v1266 = vadd.f32 %v1184, 1.0
        %v1267 = vadd.f32 %v1224, 1.0
        %v1268 = vadd.f32 %v1264, 1.0
        %v1269 = vmul.f32 %v1097, %v1265
        %v1270 = vmul.f32 %v1098, %v1266
        %v1271 = vmul.f32 %v1099, %v1267
        %v1272 = vmul.f32 %v1100, %v1268
        %v1273 = vld [vmem:[%s617] sm:$0xff]
        %v1274 = vld [vmem:[%s617 + $0x8] sm:$0xff]
        %v1275 = vld [vmem:[%s622] sm:$0xff]
        %v1276 = vld [vmem:[%s622 + $0x8] sm:$0xff]
        %1278 = vset.pattern.permute.xlu0 0
        %1279 = vperm.xlu0 %1278, %v1275
        %v1280 = vpop.permute.xlu0 %1279
        %1283 = vset.pattern.permute.xlu0 0
        %1284 = vperm.xlu0 %1283, %v1276
        %v1285 = vpop.permute.xlu0 %1284
        %vm1287 = vcmask 261120
        %v1289 = vsel %vm1287, %v1273, 0
        %v1292 = vsel %vm1287, %v1274, 0
        %1294 = vmatpush.msra.mxu0 0.0
        %1295 = vmatpush.msra.mxu0 0.0
        %1296 = vmatpush.msra.mxu0 0.0
        %1297 = vmatpush.msra.mxu0 0.0
        %1298 = vmatpush.msra.mxu0 0.0
        %1299 = vmatpush.msra.mxu0 0.0
        %1300 = vmatpush.msra.mxu0 0.0
        %1301 = vmatpush.msra.mxu0 0.0
        %1302 = vmatpush.msra.mxu0 0.0
        %1303 = vmatpush.msra.mxu0 0.0
        %1304 = vmatpush.msra.mxu0 0.0
        %1305 = vmatpush.msra.mxu0 0.0
        %1306 = vmatpush.msra.mxu0 %v1272
        %1307 = vmatpush.msra.mxu0 %v1271
        %1308 = vmatpush.msra.mxu0 %v1270
        %1309 = vmatpush.msra.mxu0 %v1269
        %1310 = vmatmul.f32.gmra.mxu0 %v1289
        %v1311 = vpop.f32.mrf.mxu0
        %v1312 = vadd.f32 %v1280, %v1311
        %1313 = vmatmul.f32.gmra.mxu0 %v1292
        %v1314 = vpop.f32.mrf.mxu0
        %v1315 = vadd.f32 %v1285, %v1314
        %1316 = vdwg.mxu0
        %v1317 = vadd.f32 %v1312, %v965
        %v1318 = vadd.f32 %v1315, %v966
        %1319 = vst [vmem:[%s13] sm:$0xff] %v1317
        %1320 = vst [vmem:[%s13 + $0x8] sm:$0xff] %v1318
        // Predicated region
        $region81: #{transformer_forward.1} parent=71 // pred_check
          %p1321 = pneg %p361
        $region82: #{transformer_forward.1} parent=71 // pred_check_branch
          %1323 = sbr.rel (%p1321) target = $region84
        $region83: #{transformer_forward.1} parent=71 // pred_region
          _
        $region84: #{transformer_forward.1} parent=71 // pred_fallthru
          _
        // Predicated region
        $region85: #{transformer_forward.1} parent=71 // pred_check
          %p1324 = pneg %p361
        $region86: #{transformer_forward.1} parent=71 // pred_check_branch
          %1326 = sbr.rel (%p1324) target = $region88
        $region87: #{transformer_forward.1} parent=71 // pred_region
          _
        $region88: #{transformer_forward.1} parent=71 // pred_fallthru
          _
      $region72: #{transformer_forward.1} parent=5 // pred_fallthru
        _
      %p1327 = scmp.le.s32.totalorder 2, %s20
      // Predicated region
      $region89: #{transformer_forward.1} parent=5 // pred_check
        %p1328 = pneg %p1327
      $region90: #{transformer_forward.1} parent=5 // pred_check_branch
        %1330 = sbr.rel (%p1328) target = $region92
      $region91: #{transformer_forward.1} parent=5 // pred_region
        %s1331 = ssub.s32 %s20, 2
      $region92: #{transformer_forward.1} parent=5 // pred_fallthru
        _
    $region6: #{transformer_forward.1} parent=1 // loop_footer
      %s24 = sadd.s32 1, %s20
    $region7: #{transformer_forward.1} parent=1 // loop_footer_branch
      %19 = sbr.rel target = $region3
    $region8: #{transformer_forward.1} parent=1 // loop_exit
      _
    %1332 = vsyncpa [#allocation3], 1
    %s1333 = scalar_lea.sflag [#allocation3], 1
    %1334 = vsyncpa %s1333, 1

</llo_original>
